<compile_context>
chip_gen: v7x
topology: tpu7x:2x2x1
jax: 0.10.0
libtpu: 0.0.40
codegen_flags: <defaults>
</compile_context>

<pallas_src>
import functools
import math

import jax
import jax.numpy as jnp
from jax.experimental import pallas as pl
from jax.experimental.pallas import tpu as pltpu


# ---------------------------------------------------------------------------
# Fused Conv1d (stride=1, "same" padding) + GroupNorm + ReLU Pallas kernel
# ---------------------------------------------------------------------------
def _conv_gn_relu_kernel(x_ref, w_ref, b_ref, gmap_ref, gmapT_ref, gamma_ref,
                         beta_ref, o_ref, *, kernel_size, padding, eps):
    # x_ref:     (1, C_in, L)       bf16   one batch element
    # w_ref:     (C_out, C_in * K)  bf16   tap-major flattened conv weight
    # b_ref:     (C_out, 1)         f32    conv bias
    # gmap_ref:  (G, C_out)         f32    group indicator matrix
    # gmapT_ref: (C_out, G)         f32    its transpose
    # gamma_ref: (C_out, 1)         f32    GroupNorm scale
    # beta_ref:  (C_out, 1)         f32    GroupNorm shift
    # o_ref:     (1, C_out, L)      f32
    c_in = x_ref.shape[1]
    length = x_ref.shape[2]
    c_out = o_ref.shape[1]
    n_groups = gmap_ref.shape[0]

    x = x_ref[0]                                                  # (C_in, L) bf16
    if padding > 0:
        zeros = jnp.zeros((c_in, padding), dtype=x.dtype)
        xp = jnp.concatenate([zeros, x, zeros], axis=1)           # (C_in, L + 2P)
    else:
        xp = x

    # im2col: stack the K shifted windows along the sublane axis so the whole
    # convolution becomes a single MXU matmul with a C_in*K contraction.
    cols = jnp.concatenate(
        [xp[:, k:k + length] for k in range(kernel_size)], axis=0)  # (K*C_in, L)

    acc = jnp.dot(w_ref[...], cols, preferred_element_type=jnp.float32)  # (C_out, L)
    acc = acc + b_ref[...]

    # ---- fused GroupNorm (per sample, per group over (C_out/G)*L elements) ----
    n = float((c_out // n_groups) * length)
    grp_sum = jnp.dot(
        gmapT_ref[...],
        jnp.dot(gmap_ref[...], acc, preferred_element_type=jnp.float32),
        preferred_element_type=jnp.float32)                       # (C_out, L)
    mean_c = jnp.sum(grp_sum, axis=1, keepdims=True) / n          # (C_out, 1)
    cen = acc - mean_c
    grp_ss = jnp.dot(
        gmapT_ref[...],
        jnp.dot(gmap_ref[...], cen * cen, preferred_element_type=jnp.float32),
        preferred_element_type=jnp.float32)                       # (C_out, L)
    var_c = jnp.sum(grp_ss, axis=1, keepdims=True) / n            # (C_out, 1)
    rstd_c = jax.lax.rsqrt(var_c + eps)                           # (C_out, 1)

    y = cen * rstd_c * gamma_ref[...] + beta_ref[...]
    y = jnp.maximum(y, 0.0)                                       # ReLU
    o_ref[0] = y.astype(o_ref.dtype)


@functools.partial(jax.jit, static_argnames=("groups", "eps"))
def conv1d_groupnorm_relu(x, w, b, gamma, beta, *, groups, eps=1e-5):
    """One fused Conv1d(k, stride=1, pad=(k-1)//2) + GroupNorm(groups) + ReLU block."""
    B, C_in, L = x.shape
    C_out, C_in_w, K = w.shape
    assert C_in == C_in_w and K % 2 == 1 and C_out % groups == 0
    pad = (K - 1) // 2

    # bf16 MXU operands (f32 accumulate happens in-kernel).
    xb = x.astype(jnp.bfloat16)
    # tap-major flatten: w_flat[o, k*C_in + i] == w[o, i, k]
    w_flat = jnp.transpose(w, (0, 2, 1)).reshape(C_out, K * C_in).astype(jnp.bfloat16)
    b2 = b.reshape(C_out, 1).astype(jnp.float32)
    gamma2 = gamma.reshape(C_out, 1).astype(jnp.float32)
    beta2 = beta.reshape(C_out, 1).astype(jnp.float32)

    cg = C_out // groups
    gmap = (jnp.arange(C_out)[None, :] // cg
            == jnp.arange(groups)[:, None]).astype(jnp.float32)   # (G, C_out)
    gmapT = gmap.T                                                # (C_out, G)

    kernel = functools.partial(_conv_gn_relu_kernel, kernel_size=K,
                               padding=pad, eps=eps)

    return pl.pallas_call(
        kernel,
        out_shape=jax.ShapeDtypeStruct((B, C_out, L), jnp.float32),
        grid_spec=pltpu.PrefetchScalarGridSpec(
            num_scalar_prefetch=0,
            grid=(B,),
            in_specs=[
                pl.BlockSpec((1, C_in, L), lambda bi: (bi, 0, 0)),
                pl.BlockSpec((C_out, K * C_in), lambda bi: (0, 0)),
                pl.BlockSpec((C_out, 1), lambda bi: (0, 0)),
                pl.BlockSpec((groups, C_out), lambda bi: (0, 0)),
                pl.BlockSpec((C_out, groups), lambda bi: (0, 0)),
                pl.BlockSpec((C_out, 1), lambda bi: (0, 0)),
                pl.BlockSpec((C_out, 1), lambda bi: (0, 0)),
            ],
            out_specs=pl.BlockSpec((1, C_out, L), lambda bi: (bi, 0, 0)),
        ),
        compiler_params=pltpu.CompilerParams(
            dimension_semantics=("parallel",),
            vmem_limit_bytes=32 * 1024 * 1024,
        ),
    )(xb, w_flat, b2, gmap, gmapT, gamma2, beta2)


# ---------------------------------------------------------------------------
# Bidirectional LSTM head (PyTorch gate order i, f, g, o)
# ---------------------------------------------------------------------------
def _lstm_direction(x, p, *, reverse):
    B, _, _ = x.shape
    H = p["W_hh"].shape[1]
    xs = jnp.swapaxes(x, 0, 1)                       # (T, B, D)
    if reverse:
        xs = xs[::-1]

    def step(carry, x_t):
        h, c = carry
        gates = (x_t @ p["W_ih"].T + p["b_ih"]) + (h @ p["W_hh"].T + p["b_hh"])
        i, f, g, o = jnp.split(gates, 4, axis=-1)
        i = jax.nn.sigmoid(i)
        f = jax.nn.sigmoid(f)
        g = jnp.tanh(g)
        o = jax.nn.sigmoid(o)
        c = f * c + i * g
        h = o * jnp.tanh(c)
        return (h, c), h

    init = (jnp.zeros((B, H), x.dtype), jnp.zeros((B, H), x.dtype))
    _, hs = jax.lax.scan(step, init, xs)
    if reverse:
        hs = hs[::-1]
    return jnp.swapaxes(hs, 0, 1)                    # (B, T, H)


def bilstm_forward(x, params):
    # TODO(synk): LSTM recurrence is inherently sequential; implemented with
    # jax.lax.scan rather than as a Pallas kernel.
    h_fwd = _lstm_direction(x, params["fwd"], reverse=False)
    h_bwd = _lstm_direction(x, params["bwd"], reverse=True)
    return jnp.concatenate([h_fwd, h_bwd], axis=-1)


# ---------------------------------------------------------------------------
# Encoder_f0.forward
# ---------------------------------------------------------------------------
def encoder_f0_forward(lf0, params, *, emb_lf0=False):
    """lf0: (B, T).  Returns (B, T, 1) if emb_lf0 is False, else (B, T, 2*hidden)."""
    x = lf0[:, None, :]                              # unsqueeze(1) -> (B, 1, T)
    if emb_lf0:
        for layer in params["conv_layers"]:
            x = conv1d_groupnorm_relu(x, layer["w"], layer["b"],
                                      layer["gamma"], layer["beta"],
                                      groups=params["groups"])
        x = jnp.transpose(x, (0, 2, 1))              # (B, T, 256)
        return bilstm_forward(x, params["lstm"])     # (B, T, 2*hidden)
    return jnp.transpose(x, (0, 2, 1))               # (B, T, 1)


# ---------------------------------------------------------------------------
# Pure-JAX reference for the fused conv block (bf16-quantized like the kernel)
# ---------------------------------------------------------------------------
def _conv_gn_relu_ref(x, w, b, gamma, beta, *, groups, eps=1e-5):
    K = w.shape[-1]
    pad = (K - 1) // 2
    y = jax.lax.conv_general_dilated(
        x.astype(jnp.bfloat16), w.astype(jnp.bfloat16),
        window_strides=(1,), padding=[(pad, pad)],
        dimension_numbers=("NCH", "OIH", "NCH"),
        preferred_element_type=jnp.float32)
    y = y + b.reshape(1, -1, 1)
    B, C, L = y.shape
    yg = y.reshape(B, groups, C // groups, L)
    mean = jnp.mean(yg, axis=(2, 3), keepdims=True)
    var = jnp.mean((yg - mean) ** 2, axis=(2, 3), keepdims=True)
    yn = ((yg - mean) * jax.lax.rsqrt(var + eps)).reshape(B, C, L)
    yn = yn * gamma.reshape(1, -1, 1) + beta.reshape(1, -1, 1)
    return jnp.maximum(yn, 0.0)


# ---------------------------------------------------------------------------
# Parameter construction
# ---------------------------------------------------------------------------
def init_encoder_f0_params(key, *, channels=256, kernel_size=5, groups=16, lf0_size=64):
    keys = jax.random.split(key, 4)
    conv_layers = []
    in_ch = 1
    for li in range(3):
        kk = jax.random.split(keys[li], 4)
        bound = 1.0 / math.sqrt(in_ch * kernel_size)
        conv_layers.append(dict(
            w=jax.random.uniform(kk[0], (channels, in_ch, kernel_size),
                                 minval=-bound, maxval=bound, dtype=jnp.float32),
            b=jax.random.uniform(kk[1], (channels,), minval=-bound, maxval=bound,
                                 dtype=jnp.float32),
            gamma=1.0 + 0.1 * jax.random.normal(kk[2], (channels,), dtype=jnp.float32),
            beta=0.1 * jax.random.normal(kk[3], (channels,), dtype=jnp.float32),
        ))
        in_ch = channels

    hidden = lf0_size // 2
    lk = jax.random.split(keys[3], 8)
    lb = 1.0 / math.sqrt(max(hidden, 1))

    def u(k, shape):
        return jax.random.uniform(k, shape, minval=-lb, maxval=lb, dtype=jnp.float32)

    lstm = dict(
        fwd=dict(W_ih=u(lk[0], (4 * hidden, channels)),
                 W_hh=u(lk[1], (4 * hidden, hidden)),
                 b_ih=u(lk[2], (4 * hidden,)),
                 b_hh=u(lk[3], (4 * hidden,))),
        bwd=dict(W_ih=u(lk[4], (4 * hidden, channels)),
                 W_hh=u(lk[5], (4 * hidden, hidden)),
                 b_ih=u(lk[6], (4 * hidden,)),
                 b_hh=u(lk[7], (4 * hidden,))),
    )
    return dict(conv_layers=conv_layers, lstm=lstm, groups=groups)


if __name__ == "__main__":
    key = jax.random.PRNGKey(0)
    k_in, k_p = jax.random.split(key)

    B, T = 2, 16
    CHANNELS, KSIZE, GROUPS = 256, 5, 16
    # NOTE: the module's default lf0_size=1 makes the LSTM hidden size 0 (degenerate);
    # the docstring says the embedding is 64-dim, so the demo uses lf0_size=64.
    LF0_SIZE = 64

    lf0 = jax.random.normal(k_in, (B, T), dtype=jnp.float32)
    params = init_encoder_f0_params(k_p, channels=CHANNELS, kernel_size=KSIZE,
                                    groups=GROUPS, lf0_size=LF0_SIZE)

    # ---- default path (emb_lf0=False): (B, T) -> (B, T, 1) ----
    y_plain = jax.block_until_ready(encoder_f0_forward(lf0, params, emb_lf0=False))
    assert y_plain.shape == (B, T, 1)
    assert jnp.allclose(y_plain[..., 0], lf0)

    # ---- embedding path (emb_lf0=True): Pallas conv stack + JAX LSTM ----
    y_emb = jax.block_until_ready(encoder_f0_forward(lf0, params, emb_lf0=True))
    assert y_emb.shape == (B, T, LF0_SIZE)
    assert bool(jnp.all(jnp.isfinite(y_emb)))

    # ---- numerical check of the fused Pallas conv+GroupNorm+ReLU stack ----
    x_pal = lf0[:, None, :]
    x_ref = lf0[:, None, :]
    for layer in params["conv_layers"]:
        x_pal = conv1d_groupnorm_relu(x_pal, layer["w"], layer["b"],
                                      layer["gamma"], layer["beta"], groups=GROUPS)
        x_ref = _conv_gn_relu_ref(x_ref, layer["w"], layer["b"],
                                  layer["gamma"], layer["beta"], groups=GROUPS)
    x_pal = jax.block_until_ready(x_pal)
    assert x_pal.shape == (B, CHANNELS, T)
    err = float(jnp.max(jnp.abs(x_pal - x_ref)))
    # tolerance reflects bf16 MXU operands / accumulation-order differences
    assert err < 1e-1, f"max abs error vs reference: {err}"

    print("KERNEL_OK")
</pallas_src>

<mosaic_0001>
module attributes {stable_mosaic.version = 11 : i64} {
  func.func @_conv_gn_relu_kernel(%arg0: i32, %arg1: memref<1x1x16xbf16, #tpu.memory_space<vmem>>, %arg2: memref<256x5xbf16, #tpu.memory_space<vmem>>, %arg3: memref<256x1xf32, #tpu.memory_space<vmem>>, %arg4: memref<16x256xf32, #tpu.memory_space<vmem>>, %arg5: memref<256x16xf32, #tpu.memory_space<vmem>>, %arg6: memref<256x1xf32, #tpu.memory_space<vmem>>, %arg7: memref<256x1xf32, #tpu.memory_space<vmem>>, %arg8: memref<1x256x16xf32, #tpu.memory_space<vmem>>) attributes {dimension_semantics = [#tpu.dimension_semantics<parallel>], iteration_bounds = array<i64: 2>, scalar_prefetch = 0 : i64, scratch_operands = 0 : i64, tpu.core_type = #tpu.core_type<tc>, window_params = [{transform_indices = @transform_0, window_bounds = array<i64: 1, 1, 16>}, {pipeline_mode = #tpu.pipeline_mode<synchronous>, transform_indices = @transform_1, window_bounds = array<i64: 256, 5>}, {pipeline_mode = #tpu.pipeline_mode<synchronous>, transform_indices = @transform_2, window_bounds = array<i64: 256, 1>}, {pipeline_mode = #tpu.pipeline_mode<synchronous>, transform_indices = @transform_3, window_bounds = array<i64: 16, 256>}, {pipeline_mode = #tpu.pipeline_mode<synchronous>, transform_indices = @transform_4, window_bounds = array<i64: 256, 16>}, {pipeline_mode = #tpu.pipeline_mode<synchronous>, transform_indices = @transform_5, window_bounds = array<i64: 256, 1>}, {pipeline_mode = #tpu.pipeline_mode<synchronous>, transform_indices = @transform_6, window_bounds = array<i64: 256, 1>}, {transform_indices = @transform_7, window_bounds = array<i64: 1, 256, 16>}]} {
    %c0 = arith.constant 0 : index
    %c0_0 = arith.constant 0 : index
    %c0_1 = arith.constant 0 : index
    %0 = vector.load %arg1[%c0, %c0_0, %c0_1] : memref<1x1x16xbf16, #tpu.memory_space<vmem>>, vector<1x1x16xbf16>
    %1 = vector.shape_cast %0 : vector<1x1x16xbf16> to vector<1x16xbf16>
    %cst = arith.constant 0.000000e+00 : bf16
    %2 = vector.broadcast %cst : bf16 to vector<1x2xbf16>
    %3 = tpu.concatenate %2, %1, %2 in 1 : vector<1x2xbf16>, vector<1x16xbf16>, vector<1x2xbf16> -> vector<1x20xbf16>
    %4 = vector.extract_strided_slice %3 {offsets = [0, 0], sizes = [1, 16], strides = [1, 1]} : vector<1x20xbf16> to vector<1x16xbf16>
    %5 = vector.extract_strided_slice %3 {offsets = [0, 1], sizes = [1, 16], strides = [1, 1]} : vector<1x20xbf16> to vector<1x16xbf16>
    %6 = vector.extract_strided_slice %3 {offsets = [0, 2], sizes = [1, 16], strides = [1, 1]} : vector<1x20xbf16> to vector<1x16xbf16>
    %7 = vector.extract_strided_slice %3 {offsets = [0, 3], sizes = [1, 16], strides = [1, 1]} : vector<1x20xbf16> to vector<1x16xbf16>
    %8 = vector.extract_strided_slice %3 {offsets = [0, 4], sizes = [1, 16], strides = [1, 1]} : vector<1x20xbf16> to vector<1x16xbf16>
    %9 = tpu.concatenate %4, %5, %6, %7, %8 in 0 : vector<1x16xbf16>, vector<1x16xbf16>, vector<1x16xbf16>, vector<1x16xbf16>, vector<1x16xbf16> -> vector<5x16xbf16>
    %c0_2 = arith.constant 0 : index
    %c0_3 = arith.constant 0 : index
    %10 = vector.load %arg2[%c0_2, %c0_3] : memref<256x5xbf16, #tpu.memory_space<vmem>>, vector<256x5xbf16>
    %cst_4 = arith.constant dense<0.000000e+00> : vector<256x16xf32>
    %11 = tpu.matmul %10, %9, %cst_4 {dimension_numbers = #tpu.dot_dimension_numbers<[1], [0], [0], [1], [0, 0, 1, 1], [], []>} : vector<256x5xbf16>, vector<5x16xbf16>, vector<256x16xf32> -> vector<256x16xf32>
    %c0_5 = arith.constant 0 : index
    %c0_6 = arith.constant 0 : index
    %12 = vector.load %arg3[%c0_5, %c0_6] : memref<256x1xf32, #tpu.memory_space<vmem>>, vector<256x1xf32>
    %13 = vector.broadcast %12 : vector<256x1xf32> to vector<256x16xf32>
    %14 = arith.addf %11, %13 : vector<256x16xf32>
    %c0_7 = arith.constant 0 : index
    %c0_8 = arith.constant 0 : index
    %15 = vector.load %arg5[%c0_7, %c0_8] : memref<256x16xf32, #tpu.memory_space<vmem>>, vector<256x16xf32>
    %c0_9 = arith.constant 0 : index
    %c0_10 = arith.constant 0 : index
    %16 = vector.load %arg4[%c0_9, %c0_10] : memref<16x256xf32, #tpu.memory_space<vmem>>, vector<16x256xf32>
    %cst_11 = arith.constant dense<0.000000e+00> : vector<16x16xf32>
    %17 = tpu.matmul %16, %14, %cst_11 {dimension_numbers = #tpu.dot_dimension_numbers<[1], [0], [0], [1], [0, 0, 1, 1], [], []>} : vector<16x256xf32>, vector<256x16xf32>, vector<16x16xf32> -> vector<16x16xf32>
    %cst_12 = arith.constant dense<0.000000e+00> : vector<256x16xf32>
    %18 = tpu.matmul %15, %17, %cst_12 {dimension_numbers = #tpu.dot_dimension_numbers<[1], [0], [0], [1], [0, 0, 1, 1], [], []>} : vector<256x16xf32>, vector<16x16xf32>, vector<256x16xf32> -> vector<256x16xf32>
    %cst_13 = arith.constant dense<0.000000e+00> : vector<256xf32>
    %19 = vector.multi_reduction <add>, %18, %cst_13 [1] : vector<256x16xf32> to vector<256xf32>
    %20 = vector.shape_cast %19 : vector<256xf32> to vector<256x1xf32>
    %cst_14 = arith.constant 2.560000e+02 : f32
    %21 = vector.broadcast %cst_14 : f32 to vector<256x1xf32>
    %22 = arith.divf %20, %21 : vector<256x1xf32>
    %23 = vector.broadcast %22 : vector<256x1xf32> to vector<256x16xf32>
    %24 = arith.subf %14, %23 : vector<256x16xf32>
    %c0_15 = arith.constant 0 : index
    %c0_16 = arith.constant 0 : index
    %25 = vector.load %arg5[%c0_15, %c0_16] : memref<256x16xf32, #tpu.memory_space<vmem>>, vector<256x16xf32>
    %c0_17 = arith.constant 0 : index
    %c0_18 = arith.constant 0 : index
    %26 = vector.load %arg4[%c0_17, %c0_18] : memref<16x256xf32, #tpu.memory_space<vmem>>, vector<16x256xf32>
    %27 = arith.mulf %24, %24 : vector<256x16xf32>
    %cst_19 = arith.constant dense<0.000000e+00> : vector<16x16xf32>
    %28 = tpu.matmul %26, %27, %cst_19 {dimension_numbers = #tpu.dot_dimension_numbers<[1], [0], [0], [1], [0, 0, 1, 1], [], []>} : vector<16x256xf32>, vector<256x16xf32>, vector<16x16xf32> -> vector<16x16xf32>
    %cst_20 = arith.constant dense<0.000000e+00> : vector<256x16xf32>
    %29 = tpu.matmul %25, %28, %cst_20 {dimension_numbers = #tpu.dot_dimension_numbers<[1], [0], [0], [1], [0, 0, 1, 1], [], []>} : vector<256x16xf32>, vector<16x16xf32>, vector<256x16xf32> -> vector<256x16xf32>
    %cst_21 = arith.constant dense<0.000000e+00> : vector<256xf32>
    %30 = vector.multi_reduction <add>, %29, %cst_21 [1] : vector<256x16xf32> to vector<256xf32>
    %31 = vector.shape_cast %30 : vector<256xf32> to vector<256x1xf32>
    %cst_22 = arith.constant 2.560000e+02 : f32
    %32 = vector.broadcast %cst_22 : f32 to vector<256x1xf32>
    %33 = arith.divf %31, %32 : vector<256x1xf32>
    %cst_23 = arith.constant 9.99999974E-6 : f32
    %34 = vector.broadcast %cst_23 : f32 to vector<256x1xf32>
    %35 = arith.addf %33, %34 : vector<256x1xf32>
    %36 = math.rsqrt %35 : vector<256x1xf32>
    %37 = vector.broadcast %36 : vector<256x1xf32> to vector<256x16xf32>
    %38 = arith.mulf %24, %37 : vector<256x16xf32>
    %c0_24 = arith.constant 0 : index
    %c0_25 = arith.constant 0 : index
    %39 = vector.load %arg6[%c0_24, %c0_25] : memref<256x1xf32, #tpu.memory_space<vmem>>, vector<256x1xf32>
    %40 = vector.broadcast %39 : vector<256x1xf32> to vector<256x16xf32>
    %41 = arith.mulf %38, %40 : vector<256x16xf32>
    %c0_26 = arith.constant 0 : index
    %c0_27 = arith.constant 0 : index
    %42 = vector.load %arg7[%c0_26, %c0_27] : memref<256x1xf32, #tpu.memory_space<vmem>>, vector<256x1xf32>
    %43 = vector.broadcast %42 : vector<256x1xf32> to vector<256x16xf32>
    %44 = arith.addf %41, %43 : vector<256x16xf32>
    %cst_28 = arith.constant 0.000000e+00 : f32
    %45 = vector.broadcast %cst_28 : f32 to vector<256x16xf32>
    %46 = arith.maximumf %44, %45 : vector<256x16xf32>
    %c0_29 = arith.constant 0 : index
    %c0_30 = arith.constant 0 : index
    %c0_31 = arith.constant 0 : index
    %47 = vector.load %arg8[%c0_29, %c0_30, %c0_31] : memref<1x256x16xf32, #tpu.memory_space<vmem>>, vector<1x256x16xf32>
    %48 = vector.shape_cast %47 : vector<1x256x16xf32> to vector<256x16xf32>
    %49 = vector.shape_cast %46 : vector<256x16xf32> to vector<1x256x16xf32>
    tpu.vector_store %arg8[%c0_29, %c0_30, %c0_31], %49 {strides = array<i32>} : memref<1x256x16xf32, #tpu.memory_space<vmem>>, vector<1x256x16xf32>,
    return
  }
  func.func @transform_0(%arg0: i32) -> (i32, i32, i32) {
    %c0_i32 = arith.constant 0 : i32
    %c0_i32_0 = arith.constant 0 : i32
    %c0_i32_1 = arith.constant 0 : i32
    return %arg0, %c0_i32, %c0_i32_0 : i32, i32, i32
  }
  func.func @transform_1(%arg0: i32) -> (i32, i32) {
    %c0_i32 = arith.constant 0 : i32
    %c0_i32_0 = arith.constant 0 : i32
    %c0_i32_1 = arith.constant 0 : i32
    return %c0_i32, %c0_i32_0 : i32, i32
  }
  func.func @transform_2(%arg0: i32) -> (i32, i32) {
    %c0_i32 = arith.constant 0 : i32
    %c0_i32_0 = arith.constant 0 : i32
    %c0_i32_1 = arith.constant 0 : i32
    return %c0_i32, %c0_i32_0 : i32, i32
  }
  func.func @transform_3(%arg0: i32) -> (i32, i32) {
    %c0_i32 = arith.constant 0 : i32
    %c0_i32_0 = arith.constant 0 : i32
    %c0_i32_1 = arith.constant 0 : i32
    return %c0_i32, %c0_i32_0 : i32, i32
  }
  func.func @transform_4(%arg0: i32) -> (i32, i32) {
    %c0_i32 = arith.constant 0 : i32
    %c0_i32_0 = arith.constant 0 : i32
    %c0_i32_1 = arith.constant 0 : i32
    return %c0_i32, %c0_i32_0 : i32, i32
  }
  func.func @transform_5(%arg0: i32) -> (i32, i32) {
    %c0_i32 = arith.constant 0 : i32
    %c0_i32_0 = arith.constant 0 : i32
    %c0_i32_1 = arith.constant 0 : i32
    return %c0_i32, %c0_i32_0 : i32, i32
  }
  func.func @transform_6(%arg0: i32) -> (i32, i32) {
    %c0_i32 = arith.constant 0 : i32
    %c0_i32_0 = arith.constant 0 : i32
    %c0_i32_1 = arith.constant 0 : i32
    return %c0_i32, %c0_i32_0 : i32, i32
  }
  func.func @transform_7(%arg0: i32) -> (i32, i32, i32) {
    %c0_i32 = arith.constant 0 : i32
    %c0_i32_0 = arith.constant 0 : i32
    %c0_i32_1 = arith.constant 0 : i32
    return %arg0, %c0_i32, %c0_i32_0 : i32, i32, i32
  }
}

</mosaic_0001>

<llo_original>
// kernel: conv1d_groupnorm_relu.1
$region0: #{conv1d_groupnorm_relu.1}
  #allocation0 [shape = 'u32[]', space=smem, size = 0x4, offset = 0x4, fixed_abs, tag = 'smem constant byte address 0x4 - core index']
  #allocation1 [shape = 'u32[144,128]{1,0:T(1,128)}', space=vmem, size = 0x12000, scoped, tag = 'internal scratch']
  %s0 = inlined_call_operand.vmem [shape: bf16[2,1,16], index: 0, kind: input, shape index: {}]
  %s1 = inlined_call_operand.vmem [shape: bf16[256,5], index: 1, kind: input, shape index: {}]
  %s2 = inlined_call_operand.vmem [shape: f32[256,1], index: 2, kind: input, shape index: {}]
  %s3 = inlined_call_operand.vmem [shape: f32[16,256], index: 3, kind: input, shape index: {}]
  %s4 = inlined_call_operand.vmem [shape: f32[256,16], index: 4, kind: input, shape index: {}]
  %s5 = inlined_call_operand.vmem [shape: f32[256,1], index: 5, kind: input, shape index: {}]
  %s6 = inlined_call_operand.vmem [shape: f32[256,1], index: 6, kind: input, shape index: {}]
  %s7 = inlined_call_operand.vmem [shape: f32[2,256,16], index: 7, kind: output, shape index: {}]
  %s8 = sld [smem:[#allocation0]]
  $region61: #{conv1d_groupnorm_relu.1} parent=0
    _
  %s10 = ssub.s32 1, %s8
  %s11 = scalar_select 0, %s10, %s8
  loop: start=0, step=1, limit=4
  $region2: #{conv1d_groupnorm_relu.1} parent=0 // loop_pre_header
    _
  $region3: #{conv1d_groupnorm_relu.1} parent=0 // loop_header
    %s13 = sphi 0, %s17
    %p14 = scmp.ge.s32.totalorder %s13, 4
    %s23 = sphi 0, %s25
    %s26 = sphi 0, %s23
    %s27 = sphi 0, %s26
    %s43 = sphi 0, %s27
    %s47 = sphi 0, %s47
    %s49 = sphi 0, %s47
    %s50 = sphi 0, %s49
    %s64 = sphi 0, %s50
    %s68 = sphi 0, %s68
    %s70 = sphi 0, %s68
    %s71 = sphi 0, %s70
    %s85 = sphi 0, %s71
    %s89 = sphi 0, %s89
    %s91 = sphi 0, %s89
    %s92 = sphi 0, %s91
    %s106 = sphi 0, %s92
    %s110 = sphi 0, %s110
    %s112 = sphi 0, %s110
    %s113 = sphi 0, %s112
    %s127 = sphi 0, %s113
    %s131 = sphi 0, %s131
    %s133 = sphi 0, %s131
    %s134 = sphi 0, %s133
    %s148 = sphi 0, %s134
    %s152 = sphi 0, %s152
    %s154 = sphi 0, %s152
    %s155 = sphi 0, %s154
    %s169 = sphi 0, %s155
    %s175 = sphi 0, %s177
    %s178 = sphi 0, %s175
    %s179 = sphi 0, %s178
    %s195 = sphi 0, %s179
  $region4: #{conv1d_groupnorm_relu.1} parent=0 // loop_header_branch
    %16 = sbr.rel (%p14) target = $region8
  $region5: #{conv1d_groupnorm_relu.1} parent=0 // loop_body
    %s18 = ssub.s32 %s13, 1
    %s19 = ssub.s32 %s13, 2
    %s20 = sadd.s32 %s13, 1
    %s21 = ssub.s32 %s13, %s20
    %p22 = scmp.eq.s32.totalorder %s21, 0
    %s24 = sadd.s32 %s23, 1
    %s25 = scalar_select %p22, %s23, %s24
    %p28 = pneg %p22
    %p29 = scmp.eq.s32.totalorder %s13, 1
    %p30 = por %p28, %p29
    %p31 = scmp.ne.s32.totalorder %s23, %s26
    %p32 = scmp.eq.s32.totalorder %s13, 0
    %p33 = por %p31, %p32
    %p34 = scmp.ne.s32.totalorder %s23, %s26
    %p35 = scmp.eq.s32.totalorder %s18, 1
    %p36 = por %p34, %p35
    %p37 = scmp.ne.s32.totalorder %s26, %s27
    %p38 = scmp.eq.s32.totalorder %s18, 0
    %p39 = por %p37, %p38
    %p40 = scmp.ne.s32.totalorder %s26, %s27
    %p41 = scmp.eq.s32.totalorder %s19, 1
    %p42 = por %p40, %p41
    %p44 = scmp.ne.s32.totalorder %s27, %s43
    %p45 = scmp.eq.s32.totalorder %s19, 0
    %p46 = por %p44, %p45
    %s48 = sadd.s32 %s47, 1
    %p51 = scmp.eq.s32.totalorder %s13, 1
    %p52 = scmp.ne.s32.totalorder %s47, %s49
    %p53 = scmp.eq.s32.totalorder %s13, 0
    %p54 = por %p52, %p53
    %p55 = scmp.ne.s32.totalorder %s47, %s49
    %p56 = scmp.eq.s32.totalorder %s18, 1
    %p57 = por %p55, %p56
    %p58 = scmp.ne.s32.totalorder %s49, %s50
    %p59 = scmp.eq.s32.totalorder %s18, 0
    %p60 = por %p58, %p59
    %p61 = scmp.ne.s32.totalorder %s49, %s50
    %p62 = scmp.eq.s32.totalorder %s19, 1
    %p63 = por %p61, %p62
    %p65 = scmp.ne.s32.totalorder %s50, %s64
    %p66 = scmp.eq.s32.totalorder %s19, 0
    %p67 = por %p65, %p66
    %s69 = sadd.s32 %s68, 1
    %p72 = scmp.eq.s32.totalorder %s13, 1
    %p73 = scmp.ne.s32.totalorder %s68, %s70
    %p74 = scmp.eq.s32.totalorder %s13, 0
    %p75 = por %p73, %p74
    %p76 = scmp.ne.s32.totalorder %s68, %s70
    %p77 = scmp.eq.s32.totalorder %s18, 1
    %p78 = por %p76, %p77
    %p79 = scmp.ne.s32.totalorder %s70, %s71
    %p80 = scmp.eq.s32.totalorder %s18, 0
    %p81 = por %p79, %p80
    %p82 = scmp.ne.s32.totalorder %s70, %s71
    %p83 = scmp.eq.s32.totalorder %s19, 1
    %p84 = por %p82, %p83
    %p86 = scmp.ne.s32.totalorder %s71, %s85
    %p87 = scmp.eq.s32.totalorder %s19, 0
    %p88 = por %p86, %p87
    %s90 = sadd.s32 %s89, 1
    %p93 = scmp.eq.s32.totalorder %s13, 1
    %p94 = scmp.ne.s32.totalorder %s89, %s91
    %p95 = scmp.eq.s32.totalorder %s13, 0
    %p96 = por %p94, %p95
    %p97 = scmp.ne.s32.totalorder %s89, %s91
    %p98 = scmp.eq.s32.totalorder %s18, 1
    %p99 = por %p97, %p98
    %p100 = scmp.ne.s32.totalorder %s91, %s92
    %p101 = scmp.eq.s32.totalorder %s18, 0
    %p102 = por %p100, %p101
    %p103 = scmp.ne.s32.totalorder %s91, %s92
    %p104 = scmp.eq.s32.totalorder %s19, 1
    %p105 = por %p103, %p104
    %p107 = scmp.ne.s32.totalorder %s92, %s106
    %p108 = scmp.eq.s32.totalorder %s19, 0
    %p109 = por %p107, %p108
    %s111 = sadd.s32 %s110, 1
    %p114 = scmp.eq.s32.totalorder %s13, 1
    %p115 = scmp.ne.s32.totalorder %s110, %s112
    %p116 = scmp.eq.s32.totalorder %s13, 0
    %p117 = por %p115, %p116
    %p118 = scmp.ne.s32.totalorder %s110, %s112
    %p119 = scmp.eq.s32.totalorder %s18, 1
    %p120 = por %p118, %p119
    %p121 = scmp.ne.s32.totalorder %s112, %s113
    %p122 = scmp.eq.s32.totalorder %s18, 0
    %p123 = por %p121, %p122
    %p124 = scmp.ne.s32.totalorder %s112, %s113
    %p125 = scmp.eq.s32.totalorder %s19, 1
    %p126 = por %p124, %p125
    %p128 = scmp.ne.s32.totalorder %s113, %s127
    %p129 = scmp.eq.s32.totalorder %s19, 0
    %p130 = por %p128, %p129
    %s132 = sadd.s32 %s131, 1
    %p135 = scmp.eq.s32.totalorder %s13, 1
    %p136 = scmp.ne.s32.totalorder %s131, %s133
    %p137 = scmp.eq.s32.totalorder %s13, 0
    %p138 = por %p136, %p137
    %p139 = scmp.ne.s32.totalorder %s131, %s133
    %p140 = scmp.eq.s32.totalorder %s18, 1
    %p141 = por %p139, %p140
    %p142 = scmp.ne.s32.totalorder %s133, %s134
    %p143 = scmp.eq.s32.totalorder %s18, 0
    %p144 = por %p142, %p143
    %p145 = scmp.ne.s32.totalorder %s133, %s134
    %p146 = scmp.eq.s32.totalorder %s19, 1
    %p147 = por %p145, %p146
    %p149 = scmp.ne.s32.totalorder %s134, %s148
    %p150 = scmp.eq.s32.totalorder %s19, 0
    %p151 = por %p149, %p150
    %s153 = sadd.s32 %s152, 1
    %p156 = scmp.eq.s32.totalorder %s13, 1
    %p157 = scmp.ne.s32.totalorder %s152, %s154
    %p158 = scmp.eq.s32.totalorder %s13, 0
    %p159 = por %p157, %p158
    %p160 = scmp.ne.s32.totalorder %s152, %s154
    %p161 = scmp.eq.s32.totalorder %s18, 1
    %p162 = por %p160, %p161
    %p163 = scmp.ne.s32.totalorder %s154, %s155
    %p164 = scmp.eq.s32.totalorder %s18, 0
    %p165 = por %p163, %p164
    %p166 = scmp.ne.s32.totalorder %s154, %s155
    %p167 = scmp.eq.s32.totalorder %s19, 1
    %p168 = por %p166, %p167
    %p170 = scmp.ne.s32.totalorder %s155, %s169
    %p171 = scmp.eq.s32.totalorder %s19, 0
    %p172 = por %p170, %p171
    %s173 = ssub.s32 %s13, %s20
    %p174 = scmp.eq.s32.totalorder %s173, 0
    %s176 = sadd.s32 %s175, 1
    %s177 = scalar_select %p174, %s175, %s176
    %p180 = pneg %p174
    %p181 = scmp.eq.s32.totalorder %s13, 1
    %p182 = por %p180, %p181
    %p183 = scmp.ne.s32.totalorder %s175, %s178
    %p184 = scmp.eq.s32.totalorder %s13, 0
    %p185 = por %p183, %p184
    %p186 = scmp.ne.s32.totalorder %s175, %s178
    %p187 = scmp.eq.s32.totalorder %s18, 1
    %p188 = por %p186, %p187
    %p189 = scmp.ne.s32.totalorder %s178, %s179
    %p190 = scmp.eq.s32.totalorder %s18, 0
    %p191 = por %p189, %p190
    %p192 = scmp.ne.s32.totalorder %s178, %s179
    %p193 = scmp.eq.s32.totalorder %s19, 1
    %p194 = por %p192, %p193
    %p196 = scmp.ne.s32.totalorder %s179, %s195
    %p197 = scmp.eq.s32.totalorder %s19, 0
    %p198 = por %p196, %p197
    %p199 = scmp.le.s32.totalorder 1, %s13
    %p200 = scmp.lt.s32.totalorder %s13, 3
    %p201 = pnand %p199, %p200
    %p202 = pneg %p201
    // Predicated region
    $region9: #{conv1d_groupnorm_relu.1} parent=5 // pred_check
      _
    $region10: #{conv1d_groupnorm_relu.1} parent=5 // pred_check_branch
      %204 = sbr.rel (%p201) target = $region12
    $region11: #{conv1d_groupnorm_relu.1} parent=5 // pred_region
      %s205 = ssub.s32 %s13, 1
      // Predicated region
      $region13: #{conv1d_groupnorm_relu.1} parent=11 // pred_check
        %p206 = pneg %p60
      $region14: #{conv1d_groupnorm_relu.1} parent=11 // pred_check_branch
        %208 = sbr.rel (%p206) target = $region16
      $region15: #{conv1d_groupnorm_relu.1} parent=11 // pred_region
        _
      $region16: #{conv1d_groupnorm_relu.1} parent=11 // pred_fallthru
        _
      // Predicated region
      $region17: #{conv1d_groupnorm_relu.1} parent=11 // pred_check
        %p209 = pneg %p81
      $region18: #{conv1d_groupnorm_relu.1} parent=11 // pred_check_branch
        %211 = sbr.rel (%p209) target = $region20
      $region19: #{conv1d_groupnorm_relu.1} parent=11 // pred_region
        _
      $region20: #{conv1d_groupnorm_relu.1} parent=11 // pred_fallthru
        _
      // Predicated region
      $region21: #{conv1d_groupnorm_relu.1} parent=11 // pred_check
        %p212 = pneg %p102
      $region22: #{conv1d_groupnorm_relu.1} parent=11 // pred_check_branch
        %214 = sbr.rel (%p212) target = $region24
      $region23: #{conv1d_groupnorm_relu.1} parent=11 // pred_region
        _
      $region24: #{conv1d_groupnorm_relu.1} parent=11 // pred_fallthru
        _
      // Predicated region
      $region25: #{conv1d_groupnorm_relu.1} parent=11 // pred_check
        %p215 = pneg %p123
      $region26: #{conv1d_groupnorm_relu.1} parent=11 // pred_check_branch
        %217 = sbr.rel (%p215) target = $region28
      $region27: #{conv1d_groupnorm_relu.1} parent=11 // pred_region
        _
      $region28: #{conv1d_groupnorm_relu.1} parent=11 // pred_fallthru
        _
      // Predicated region
      $region29: #{conv1d_groupnorm_relu.1} parent=11 // pred_check
        %p218 = pneg %p144
      $region30: #{conv1d_groupnorm_relu.1} parent=11 // pred_check_branch
        %220 = sbr.rel (%p218) target = $region32
      $region31: #{conv1d_groupnorm_relu.1} parent=11 // pred_region
        _
      $region32: #{conv1d_groupnorm_relu.1} parent=11 // pred_fallthru
        _
      // Predicated region
      $region33: #{conv1d_groupnorm_relu.1} parent=11 // pred_check
        %p221 = pneg %p165
      $region34: #{conv1d_groupnorm_relu.1} parent=11 // pred_check_branch
        %223 = sbr.rel (%p221) target = $region36
      $region35: #{conv1d_groupnorm_relu.1} parent=11 // pred_region
        _
      $region36: #{conv1d_groupnorm_relu.1} parent=11 // pred_fallthru
        _
    $region12: #{conv1d_groupnorm_relu.1} parent=5 // pred_fallthru
      _
    %p224 = scmp.lt.s32.totalorder %s13, 2
    // Predicated region
    $region37: #{conv1d_groupnorm_relu.1} parent=5 // pred_check
      %p225 = pneg %p224
    $region38: #{conv1d_groupnorm_relu.1} parent=5 // pred_check_branch
      %227 = sbr.rel (%p225) target = $region40
    $region39: #{conv1d_groupnorm_relu.1} parent=5 // pred_region
      // Predicated region
      $region41: #{conv1d_groupnorm_relu.1} parent=39 // pred_check
        %p228 = pneg %p33
      $region42: #{conv1d_groupnorm_relu.1} parent=39 // pred_check_branch
        %230 = sbr.rel (%p228) target = $region44
      $region43: #{conv1d_groupnorm_relu.1} parent=39 // pred_region
        %p231 = scmp.lt.s32.totalorder %s13, 1
        %s232 = scalar_select %p231, %s13, 1
        %s233 = scalar_lea.vmem %s0, %s232
      $region44: #{conv1d_groupnorm_relu.1} parent=39 // pred_fallthru
        _
    $region40: #{conv1d_groupnorm_relu.1} parent=5 // pred_fallthru
      _
    %p234 = scmp.le.s32.totalorder 1, %s13
    %p235 = scmp.lt.s32.totalorder %s13, 3
    %p236 = pnand %p234, %p235
    %p237 = pneg %p236
    // Predicated region
    $region45: #{conv1d_groupnorm_relu.1} parent=5 // pred_check
      _
    $region46: #{conv1d_groupnorm_relu.1} parent=5 // pred_check_branch
      %239 = sbr.rel (%p236) target = $region48
    $region47: #{conv1d_groupnorm_relu.1} parent=5 // pred_region
      %s240 = ssub.s32 %s13, 1
      %p241 = scmp.lt.s32.totalorder %s18, 1
      %s242 = scalar_select %p241, %s18, 1
      %s243 = scalar_lea.vmem %s0, %s242
      %p244 = pneg %p39
      %p245 = pneg %p36
      %p246 = pneg %p60
      %p247 = pneg %p57
      %p248 = pneg %p81
      %p249 = pneg %p78
      %p250 = pneg %p102
      %p251 = pneg %p99
      %p252 = pneg %p123
      %p253 = pneg %p120
      %p254 = pneg %p144
      %p255 = pneg %p141
      %p256 = pneg %p165
      %p257 = pneg %p162
      %p258 = pneg %p191
      %p259 = pneg %p188
      %p260 = scmp.lt.s32.totalorder %s18, 1
      %s261 = scalar_select %p260, %s18, 1
      %s262 = smul.addr %s261, 32
      %s263 = smul.addr %s262, 8
      %s264 = scalar_lea.vmem %s7, %s263
      %p265 = scmp.lt.s32.totalorder %s18, 1
      %s266 = scalar_select %p265, %s18, 1
      %s267 = scalar_lea.vmem %s0, %s266
      %p268 = scmp.lt.s32.totalorder %s18, 1
      %s269 = scalar_select %p268, %s18, 1
      %s270 = smul.addr %s269, 32
      %s271 = smul.addr %s270, 8
      %s272 = scalar_lea.vmem %s7, %s271
      %v274 = vld [vmem:[%s267] sm:$0x1]
      %v277 = vunpack.c.l.s4 1966171168
      %v278 = vunpack.c.0.s8 %v277
      %v279 = vlaneseq
      %v280 = vshrl.u32 %v279, 7
      %v281 = vsub.s32 %v278, %v280
      %v282 = vrot.slane %v274, %v281
      %v284 = vunpack.c.l.s4 1966171168
      %v285 = vunpack.c.0.s8 %v284
      %v286 = vlaneseq
      %v287 = vshrl.u32 %v286, 7
      %v288 = vsub.s32 %v285, %v287
      %v289 = vrot.slane %v282, %v288
      %290 = vrot.lane.b32.xlu0 %v289, 2
      %v291 = vpop.permute.xlu0 %290
      %vm292 = vcmask 15360
      %v295 = vsel %vm292, 0, %v291
      %vm296 = vcmask 146432
      %v297 = vsel %vm296, %v295, 0
      %v299 = vshll.u32 %v297, 16
      %301 = vrot.lane.b32.xlu0 %v299, 127
      %v302 = vpop.permute.xlu0 %301
      %v305 = vrot.slane %v297, 7
      %306 = vrot.lane.b32.xlu0 %v305, 126
      %v307 = vpop.permute.xlu0 %306
      %v308 = vrot.slane %v299, 7
      %309 = vrot.lane.b32.xlu0 %v308, 125
      %v310 = vpop.permute.xlu0 %309
      %v312 = vrot.slane %v297, 6
      %313 = vrot.lane.b32.xlu0 %v312, 124
      %v314 = vpop.permute.xlu0 %313
      %vm315 = vcmask 1040384
      %vm316 = vsmask.f32 256
      %vm317 = vmand %vm315, %vm316
      %v318 = vsel %vm317, %v297, %v302
      %vm319 = vcmask 1040384
      %v322 = vsel %vm319, %v318, %v307
      %vm324 = vcmask 1041408
      %vm325 = vsmask.f32 1280
      %vm326 = vmand %vm324, %vm325
      %v327 = vsel %vm326, %v322, %v310
      %vm328 = vcmask 1041408
      %v331 = vsel %vm328, %v327, %v314
      %v332 = vld [vmem:[%s1] sm:$0xf]
      %v333 = vld [vmem:[%s1 + $0x4] sm:$0xf]
      %v334 = vld [vmem:[%s1 + $0x8] sm:$0xf]
      %v335 = vld [vmem:[%s1 + $0xc] sm:$0xf]
      %v336 = vld [vmem:[%s1 + $0x10] sm:$0xf]
      %v337 = vld [vmem:[%s1 + $0x14] sm:$0xf]
      %v338 = vld [vmem:[%s1 + $0x18] sm:$0xf]
      %v339 = vld [vmem:[%s1 + $0x1c] sm:$0xf]
      %v340 = vld [vmem:[%s1 + $0x20] sm:$0xf]
      %v341 = vld [vmem:[%s1 + $0x24] sm:$0xf]
      %v342 = vld [vmem:[%s1 + $0x28] sm:$0xf]
      %v343 = vld [vmem:[%s1 + $0x2c] sm:$0xf]
      %v344 = vld [vmem:[%s1 + $0x30] sm:$0xf]
      %v345 = vld [vmem:[%s1 + $0x34] sm:$0xf]
      %v346 = vld [vmem:[%s1 + $0x38] sm:$0xf]
      %v347 = vld [vmem:[%s1 + $0x3c] sm:$0xf]
      %v348 = vld [vmem:[%s1 + $0x40] sm:$0xf]
      %v349 = vld [vmem:[%s1 + $0x44] sm:$0xf]
      %v350 = vld [vmem:[%s1 + $0x48] sm:$0xf]
      %v351 = vld [vmem:[%s1 + $0x4c] sm:$0xf]
      %v352 = vld [vmem:[%s1 + $0x50] sm:$0xf]
      %v353 = vld [vmem:[%s1 + $0x54] sm:$0xf]
      %v354 = vld [vmem:[%s1 + $0x58] sm:$0xf]
      %v355 = vld [vmem:[%s1 + $0x5c] sm:$0xf]
      %v356 = vld [vmem:[%s1 + $0x60] sm:$0xf]
      %v357 = vld [vmem:[%s1 + $0x64] sm:$0xf]
      %v358 = vld [vmem:[%s1 + $0x68] sm:$0xf]
      %v359 = vld [vmem:[%s1 + $0x6c] sm:$0xf]
      %v360 = vld [vmem:[%s1 + $0x70] sm:$0xf]
      %v361 = vld [vmem:[%s1 + $0x74] sm:$0xf]
      %v362 = vld [vmem:[%s1 + $0x78] sm:$0xf]
      %v363 = vld [vmem:[%s1 + $0x7c] sm:$0xf]
      %v364 = vld [vmem:[%s2] sm:$0xff]
      %v365 = vld [vmem:[%s2 + $0x8] sm:$0xff]
      %v366 = vld [vmem:[%s2 + $0x10] sm:$0xff]
      %v367 = vld [vmem:[%s2 + $0x18] sm:$0xff]
      %v368 = vld [vmem:[%s2 + $0x20] sm:$0xff]
      %v369 = vld [vmem:[%s2 + $0x28] sm:$0xff]
      %v370 = vld [vmem:[%s2 + $0x30] sm:$0xff]
      %v371 = vld [vmem:[%s2 + $0x38] sm:$0xff]
      %v372 = vld [vmem:[%s2 + $0x40] sm:$0xff]
      %v373 = vld [vmem:[%s2 + $0x48] sm:$0xff]
      %v374 = vld [vmem:[%s2 + $0x50] sm:$0xff]
      %v375 = vld [vmem:[%s2 + $0x58] sm:$0xff]
      %v376 = vld [vmem:[%s2 + $0x60] sm:$0xff]
      %v377 = vld [vmem:[%s2 + $0x68] sm:$0xff]
      %v378 = vld [vmem:[%s2 + $0x70] sm:$0xff]
      %v379 = vld [vmem:[%s2 + $0x78] sm:$0xff]
      %v380 = vld [vmem:[%s2 + $0x80] sm:$0xff]
      %v381 = vld [vmem:[%s2 + $0x88] sm:$0xff]
      %v382 = vld [vmem:[%s2 + $0x90] sm:$0xff]
      %v383 = vld [vmem:[%s2 + $0x98] sm:$0xff]
      %v384 = vld [vmem:[%s2 + $0xa0] sm:$0xff]
      %v385 = vld [vmem:[%s2 + $0xa8] sm:$0xff]
      %v386 = vld [vmem:[%s2 + $0xb0] sm:$0xff]
      %v387 = vld [vmem:[%s2 + $0xb8] sm:$0xff]
      %v388 = vld [vmem:[%s2 + $0xc0] sm:$0xff]
      %v389 = vld [vmem:[%s2 + $0xc8] sm:$0xff]
      %v390 = vld [vmem:[%s2 + $0xd0] sm:$0xff]
      %v391 = vld [vmem:[%s2 + $0xd8] sm:$0xff]
      %v392 = vld [vmem:[%s2 + $0xe0] sm:$0xff]
      %v393 = vld [vmem:[%s2 + $0xe8] sm:$0xff]
      %v394 = vld [vmem:[%s2 + $0xf0] sm:$0xff]
      %v395 = vld [vmem:[%s2 + $0xf8] sm:$0xff]
      %397 = vset.pattern.permute.xlu0 0
      %398 = vperm.xlu0 %397, %v364
      %v399 = vpop.permute.xlu0 %398
      %402 = vset.pattern.permute.xlu0 0
      %403 = vperm.xlu0 %402, %v365
      %v404 = vpop.permute.xlu0 %403
      %407 = vset.pattern.permute.xlu0 0
      %408 = vperm.xlu0 %407, %v366
      %v409 = vpop.permute.xlu0 %408
      %412 = vset.pattern.permute.xlu0 0
      %413 = vperm.xlu0 %412, %v367
      %v414 = vpop.permute.xlu0 %413
      %417 = vset.pattern.permute.xlu0 0
      %418 = vperm.xlu0 %417, %v368
      %v419 = vpop.permute.xlu0 %418
      %422 = vset.pattern.permute.xlu0 0
      %423 = vperm.xlu0 %422, %v369
      %v424 = vpop.permute.xlu0 %423
      %427 = vset.pattern.permute.xlu0 0
      %428 = vperm.xlu0 %427, %v370
      %v429 = vpop.permute.xlu0 %428
      %432 = vset.pattern.permute.xlu0 0
      %433 = vperm.xlu0 %432, %v371
      %v434 = vpop.permute.xlu0 %433
      %437 = vset.pattern.permute.xlu0 0
      %438 = vperm.xlu0 %437, %v372
      %v439 = vpop.permute.xlu0 %438
      %442 = vset.pattern.permute.xlu0 0
      %443 = vperm.xlu0 %442, %v373
      %v444 = vpop.permute.xlu0 %443
      %447 = vset.pattern.permute.xlu0 0
      %448 = vperm.xlu0 %447, %v374
      %v449 = vpop.permute.xlu0 %448
      %452 = vset.pattern.permute.xlu0 0
      %453 = vperm.xlu0 %452, %v375
      %v454 = vpop.permute.xlu0 %453
      %457 = vset.pattern.permute.xlu0 0
      %458 = vperm.xlu0 %457, %v376
      %v459 = vpop.permute.xlu0 %458
      %462 = vset.pattern.permute.xlu0 0
      %463 = vperm.xlu0 %462, %v377
      %v464 = vpop.permute.xlu0 %463
      %467 = vset.pattern.permute.xlu0 0
      %468 = vperm.xlu0 %467, %v378
      %v469 = vpop.permute.xlu0 %468
      %472 = vset.pattern.permute.xlu0 0
      %473 = vperm.xlu0 %472, %v379
      %v474 = vpop.permute.xlu0 %473
      %477 = vset.pattern.permute.xlu0 0
      %478 = vperm.xlu0 %477, %v380
      %v479 = vpop.permute.xlu0 %478
      %482 = vset.pattern.permute.xlu0 0
      %483 = vperm.xlu0 %482, %v381
      %v484 = vpop.permute.xlu0 %483
      %487 = vset.pattern.permute.xlu0 0
      %488 = vperm.xlu0 %487, %v382
      %v489 = vpop.permute.xlu0 %488
      %492 = vset.pattern.permute.xlu0 0
      %493 = vperm.xlu0 %492, %v383
      %v494 = vpop.permute.xlu0 %493
      %497 = vset.pattern.permute.xlu0 0
      %498 = vperm.xlu0 %497, %v384
      %v499 = vpop.permute.xlu0 %498
      %502 = vset.pattern.permute.xlu0 0
      %503 = vperm.xlu0 %502, %v385
      %v504 = vpop.permute.xlu0 %503
      %507 = vset.pattern.permute.xlu0 0
      %508 = vperm.xlu0 %507, %v386
      %v509 = vpop.permute.xlu0 %508
      %512 = vset.pattern.permute.xlu0 0
      %513 = vperm.xlu0 %512, %v387
      %v514 = vpop.permute.xlu0 %513
      %517 = vset.pattern.permute.xlu0 0
      %518 = vperm.xlu0 %517, %v388
      %v519 = vpop.permute.xlu0 %518
      %522 = vset.pattern.permute.xlu0 0
      %523 = vperm.xlu0 %522, %v389
      %v524 = vpop.permute.xlu0 %523
      %527 = vset.pattern.permute.xlu0 0
      %528 = vperm.xlu0 %527, %v390
      %v529 = vpop.permute.xlu0 %528
      %532 = vset.pattern.permute.xlu0 0
      %533 = vperm.xlu0 %532, %v391
      %v534 = vpop.permute.xlu0 %533
      %537 = vset.pattern.permute.xlu0 0
      %538 = vperm.xlu0 %537, %v392
      %v539 = vpop.permute.xlu0 %538
      %542 = vset.pattern.permute.xlu0 0
      %543 = vperm.xlu0 %542, %v393
      %v544 = vpop.permute.xlu0 %543
      %547 = vset.pattern.permute.xlu0 0
      %548 = vperm.xlu0 %547, %v394
      %v549 = vpop.permute.xlu0 %548
      %552 = vset.pattern.permute.xlu0 0
      %553 = vperm.xlu0 %552, %v395
      %v554 = vpop.permute.xlu0 %553
      %v588 = vunpack.c.l.b16 %v332
      %v589 = vunpack.c.l.b16 %v333
      %v590 = vunpack.c.l.b16 %v334
      %v591 = vunpack.c.l.b16 %v335
      %v592 = vunpack.c.l.b16 %v336
      %v593 = vunpack.c.l.b16 %v337
      %v594 = vunpack.c.l.b16 %v338
      %v595 = vunpack.c.l.b16 %v339
      %v596 = vunpack.c.l.b16 %v340
      %v597 = vunpack.c.l.b16 %v341
      %v598 = vunpack.c.l.b16 %v342
      %v599 = vunpack.c.l.b16 %v343
      %v600 = vunpack.c.l.b16 %v344
      %v601 = vunpack.c.l.b16 %v345
      %v602 = vunpack.c.l.b16 %v346
      %v603 = vunpack.c.l.b16 %v347
      %v604 = vunpack.c.l.b16 %v348
      %v605 = vunpack.c.l.b16 %v349
      %v606 = vunpack.c.l.b16 %v350
      %v607 = vunpack.c.l.b16 %v351
      %v608 = vunpack.c.l.b16 %v352
      %v609 = vunpack.c.l.b16 %v353
      %v610 = vunpack.c.l.b16 %v354
      %v611 = vunpack.c.l.b16 %v355
      %v612 = vunpack.c.l.b16 %v356
      %v613 = vunpack.c.l.b16 %v357
      %v614 = vunpack.c.l.b16 %v358
      %v615 = vunpack.c.l.b16 %v359
      %v616 = vunpack.c.l.b16 %v360
      %v617 = vunpack.c.l.b16 %v361
      %v618 = vunpack.c.l.b16 %v362
      %v619 = vunpack.c.l.b16 %v363
      %v620 = vpack.c.b16 %v589, %v588
      %v621 = vpack.c.b16 %v591, %v590
      %v622 = vpack.c.b16 %v593, %v592
      %v623 = vpack.c.b16 %v595, %v594
      %v624 = vpack.c.b16 %v597, %v596
      %v625 = vpack.c.b16 %v599, %v598
      %v626 = vpack.c.b16 %v601, %v600
      %v627 = vpack.c.b16 %v603, %v602
      %v628 = vpack.c.b16 %v605, %v604
      %v629 = vpack.c.b16 %v607, %v606
      %v630 = vpack.c.b16 %v609, %v608
      %v631 = vpack.c.b16 %v611, %v610
      %v632 = vpack.c.b16 %v613, %v612
      %v633 = vpack.c.b16 %v615, %v614
      %v634 = vpack.c.b16 %v617, %v616
      %v635 = vpack.c.b16 %v619, %v618
      %vm636 = vcmask 39936
      %v638 = vsel %vm636, %v620, 0
      %v641 = vsel %vm636, %v621, 0
      %v644 = vsel %vm636, %v622, 0
      %v647 = vsel %vm636, %v623, 0
      %v650 = vsel %vm636, %v624, 0
      %v653 = vsel %vm636, %v625, 0
      %v656 = vsel %vm636, %v626, 0
      %v659 = vsel %vm636, %v627, 0
      %v662 = vsel %vm636, %v628, 0
      %v665 = vsel %vm636, %v629, 0
      %v668 = vsel %vm636, %v630, 0
      %v671 = vsel %vm636, %v631, 0
      %v674 = vsel %vm636, %v632, 0
      %v677 = vsel %vm636, %v633, 0
      %v680 = vsel %vm636, %v634, 0
      %v683 = vsel %vm636, %v635, 0
      %vm685 = vcmask 1042432
      %v686 = vsel %vm328, 4294967295, 65535
      %v687 = vsel %vm685, %v686, 0
      %v688 = vand.u32 %v331, %v687
      %690 = vmatprep.subr.bf16.mxu0 0
      %691 = vmatpush1.bf16.msra.mxu0 %v688
      %692 = vmatprep.subr.bf16.mxu0 0
      %693 = vmatpush1.bf16.msra.mxu0 0
      %694 = vmatprep.subr.bf16.mxu0 0
      %695 = vmatpush1.bf16.msra.mxu0 0
      %696 = vmatprep.subr.bf16.mxu0 0
      %697 = vmatpush1.bf16.msra.mxu0 0
      %698 = vmatprep.subr.bf16.mxu0 0
      %699 = vmatpush1.bf16.msra.mxu0 0
      %700 = vmatprep.subr.bf16.mxu0 0
      %701 = vmatpush1.bf16.msra.mxu0 0
      %702 = vmatprep.subr.bf16.mxu0 0
      %703 = vmatpush1.bf16.msra.mxu0 0
      %704 = vmatprep.subr.bf16.mxu0 0
      %705 = vmatpush1.bf16.msra.mxu0 0
      %706 = vmatprep.subr.bf16.mxu0 0
      %707 = vmatpush1.bf16.msra.mxu0 0
      %708 = vmatprep.subr.bf16.mxu0 0
      %709 = vmatpush1.bf16.msra.mxu0 0
      %710 = vmatprep.subr.bf16.mxu0 0
      %711 = vmatpush1.bf16.msra.mxu0 0
      %712 = vmatprep.subr.bf16.mxu0 0
      %713 = vmatpush1.bf16.msra.mxu0 0
      %714 = vmatprep.subr.bf16.mxu0 0
      %715 = vmatpush1.bf16.msra.mxu0 0
      %716 = vmatprep.subr.bf16.mxu0 0
      %717 = vmatpush1.bf16.msra.mxu0 0
      %718 = vmatprep.subr.bf16.mxu0 0
      %719 = vmatpush1.bf16.msra.mxu0 0
      %720 = vmatprep.subr.bf16.mxu0 0
      %721 = vmatpush1.bf16.msra.mxu0 0
      %722 = vmatprep.mubr.bf16.mxu0 0
      %723 = vmatmul.mubr.bf16.gmra.mrb[0].mxu0 %v638
      %v724 = vpop.f32.mrb[0].mxu0
      %v725 = vadd.f32 %v399, %v724
      %v726 = vpop.f32.mrb[0].mxu0
      %v727 = vpop.f32.mrb[0].mxu0
      %v728 = vadd.f32 %v404, %v727
      %v729 = vpop.f32.mrb[0].mxu0
      %730 = vmatprep.mubr.bf16.mxu0 0
      %731 = vmatmul.mubr.bf16.gmra.mrb[0].mxu0 %v641
      %v732 = vpop.f32.mrb[0].mxu0
      %v733 = vadd.f32 %v409, %v732
      %v734 = vpop.f32.mrb[0].mxu0
      %v735 = vpop.f32.mrb[0].mxu0
      %v736 = vadd.f32 %v414, %v735
      %v737 = vpop.f32.mrb[0].mxu0
      %738 = vmatprep.mubr.bf16.mxu0 0
      %739 = vmatmul.mubr.bf16.gmra.mrb[0].mxu0 %v644
      %v740 = vpop.f32.mrb[0].mxu0
      %v741 = vadd.f32 %v419, %v740
      %v742 = vpop.f32.mrb[0].mxu0
      %v743 = vpop.f32.mrb[0].mxu0
      %v744 = vadd.f32 %v424, %v743
      %v745 = vpop.f32.mrb[0].mxu0
      %746 = vmatprep.mubr.bf16.mxu0 0
      %747 = vmatmul.mubr.bf16.gmra.mrb[0].mxu0 %v647
      %v748 = vpop.f32.mrb[0].mxu0
      %v749 = vadd.f32 %v429, %v748
      %v750 = vpop.f32.mrb[0].mxu0
      %v751 = vpop.f32.mrb[0].mxu0
      %v752 = vadd.f32 %v434, %v751
      %v753 = vpop.f32.mrb[0].mxu0
      %754 = vmatprep.mubr.bf16.mxu0 0
      %755 = vmatmul.mubr.bf16.gmra.mrb[0].mxu0 %v650
      %v756 = vpop.f32.mrb[0].mxu0
      %v757 = vadd.f32 %v439, %v756
      %v758 = vpop.f32.mrb[0].mxu0
      %v759 = vpop.f32.mrb[0].mxu0
      %v760 = vadd.f32 %v444, %v759
      %v761 = vpop.f32.mrb[0].mxu0
      %762 = vmatprep.mubr.bf16.mxu0 0
      %763 = vmatmul.mubr.bf16.gmra.mrb[0].mxu0 %v653
      %v764 = vpop.f32.mrb[0].mxu0
      %v765 = vadd.f32 %v449, %v764
      %v766 = vpop.f32.mrb[0].mxu0
      %v767 = vpop.f32.mrb[0].mxu0
      %v768 = vadd.f32 %v454, %v767
      %v769 = vpop.f32.mrb[0].mxu0
      %770 = vmatprep.mubr.bf16.mxu0 0
      %771 = vmatmul.mubr.bf16.gmra.mrb[0].mxu0 %v656
      %v772 = vpop.f32.mrb[0].mxu0
      %v773 = vadd.f32 %v459, %v772
      %v774 = vpop.f32.mrb[0].mxu0
      %v775 = vpop.f32.mrb[0].mxu0
      %v776 = vadd.f32 %v464, %v775
      %v777 = vpop.f32.mrb[0].mxu0
      %778 = vmatprep.mubr.bf16.mxu0 0
      %779 = vmatmul.mubr.bf16.gmra.mrb[0].mxu0 %v659
      %v780 = vpop.f32.mrb[0].mxu0
      %v781 = vadd.f32 %v469, %v780
      %v782 = vpop.f32.mrb[0].mxu0
      %v783 = vpop.f32.mrb[0].mxu0
      %v784 = vadd.f32 %v474, %v783
      %v785 = vpop.f32.mrb[0].mxu0
      %786 = vmatprep.mubr.bf16.mxu0 0
      %787 = vmatmul.mubr.bf16.gmra.mrb[0].mxu0 %v662
      %v788 = vpop.f32.mrb[0].mxu0
      %v789 = vadd.f32 %v479, %v788
      %v790 = vpop.f32.mrb[0].mxu0
      %v791 = vpop.f32.mrb[0].mxu0
      %v792 = vadd.f32 %v484, %v791
      %v793 = vpop.f32.mrb[0].mxu0
      %794 = vmatprep.mubr.bf16.mxu0 0
      %795 = vmatmul.mubr.bf16.gmra.mrb[0].mxu0 %v665
      %v796 = vpop.f32.mrb[0].mxu0
      %v797 = vadd.f32 %v489, %v796
      %v798 = vpop.f32.mrb[0].mxu0
      %v799 = vpop.f32.mrb[0].mxu0
      %v800 = vadd.f32 %v494, %v799
      %v801 = vpop.f32.mrb[0].mxu0
      %802 = vmatprep.mubr.bf16.mxu0 0
      %803 = vmatmul.mubr.bf16.gmra.mrb[0].mxu0 %v668
      %v804 = vpop.f32.mrb[0].mxu0
      %v805 = vadd.f32 %v499, %v804
      %v806 = vpop.f32.mrb[0].mxu0
      %v807 = vpop.f32.mrb[0].mxu0
      %v808 = vadd.f32 %v504, %v807
      %v809 = vpop.f32.mrb[0].mxu0
      %810 = vmatprep.mubr.bf16.mxu0 0
      %811 = vmatmul.mubr.bf16.gmra.mrb[0].mxu0 %v671
      %v812 = vpop.f32.mrb[0].mxu0
      %v813 = vadd.f32 %v509, %v812
      %v814 = vpop.f32.mrb[0].mxu0
      %v815 = vpop.f32.mrb[0].mxu0
      %v816 = vadd.f32 %v514, %v815
      %v817 = vpop.f32.mrb[0].mxu0
      %818 = vmatprep.mubr.bf16.mxu0 0
      %819 = vmatmul.mubr.bf16.gmra.mrb[0].mxu0 %v674
      %v820 = vpop.f32.mrb[0].mxu0
      %v821 = vadd.f32 %v519, %v820
      %v822 = vpop.f32.mrb[0].mxu0
      %v823 = vpop.f32.mrb[0].mxu0
      %v824 = vadd.f32 %v524, %v823
      %v825 = vpop.f32.mrb[0].mxu0
      %826 = vmatprep.mubr.bf16.mxu0 0
      %827 = vmatmul.mubr.bf16.gmra.mrb[0].mxu0 %v677
      %v828 = vpop.f32.mrb[0].mxu0
      %v829 = vadd.f32 %v529, %v828
      %v830 = vpop.f32.mrb[0].mxu0
      %v831 = vpop.f32.mrb[0].mxu0
      %v832 = vadd.f32 %v534, %v831
      %v833 = vpop.f32.mrb[0].mxu0
      %834 = vmatprep.mubr.bf16.mxu0 0
      %835 = vmatmul.mubr.bf16.gmra.mrb[0].mxu0 %v680
      %v836 = vpop.f32.mrb[0].mxu0
      %v837 = vadd.f32 %v539, %v836
      %v838 = vpop.f32.mrb[0].mxu0
      %v839 = vpop.f32.mrb[0].mxu0
      %v840 = vadd.f32 %v544, %v839
      %v841 = vpop.f32.mrb[0].mxu0
      %842 = vmatprep.mubr.bf16.mxu0 0
      %843 = vmatmul.mubr.bf16.gmra.mrb[0].mxu0 %v683
      %v844 = vpop.f32.mrb[0].mxu0
      %v845 = vadd.f32 %v549, %v844
      %v846 = vpop.f32.mrb[0].mxu0
      %v847 = vpop.f32.mrb[0].mxu0
      %v848 = vadd.f32 %v554, %v847
      %v849 = vpop.f32.mrb[0].mxu0
      %850 = vdwg.mxu0
      %v851 = vld [vmem:[%s4] sm:$0xff]
      %v852 = vld [vmem:[%s4 + $0x8] sm:$0xff]
      %v853 = vld [vmem:[%s4 + $0x10] sm:$0xff]
      %v854 = vld [vmem:[%s4 + $0x18] sm:$0xff]
      %v855 = vld [vmem:[%s4 + $0x20] sm:$0xff]
      %v856 = vld [vmem:[%s4 + $0x28] sm:$0xff]
      %v857 = vld [vmem:[%s4 + $0x30] sm:$0xff]
      %v858 = vld [vmem:[%s4 + $0x38] sm:$0xff]
      %v859 = vld [vmem:[%s4 + $0x40] sm:$0xff]
      %v860 = vld [vmem:[%s4 + $0x48] sm:$0xff]
      %v861 = vld [vmem:[%s4 + $0x50] sm:$0xff]
      %v862 = vld [vmem:[%s4 + $0x58] sm:$0xff]
      %v863 = vld [vmem:[%s4 + $0x60] sm:$0xff]
      %v864 = vld [vmem:[%s4 + $0x68] sm:$0xff]
      %v865 = vld [vmem:[%s4 + $0x70] sm:$0xff]
      %v866 = vld [vmem:[%s4 + $0x78] sm:$0xff]
      %v867 = vld [vmem:[%s4 + $0x80] sm:$0xff]
      %v868 = vld [vmem:[%s4 + $0x88] sm:$0xff]
      %v869 = vld [vmem:[%s4 + $0x90] sm:$0xff]
      %v870 = vld [vmem:[%s4 + $0x98] sm:$0xff]
      %v871 = vld [vmem:[%s4 + $0xa0] sm:$0xff]
      %v872 = vld [vmem:[%s4 + $0xa8] sm:$0xff]
      %v873 = vld [vmem:[%s4 + $0xb0] sm:$0xff]
      %v874 = vld [vmem:[%s4 + $0xb8] sm:$0xff]
      %v875 = vld [vmem:[%s4 + $0xc0] sm:$0xff]
      %v876 = vld [vmem:[%s4 + $0xc8] sm:$0xff]
      %v877 = vld [vmem:[%s4 + $0xd0] sm:$0xff]
      %v878 = vld [vmem:[%s4 + $0xd8] sm:$0xff]
      %v879 = vld [vmem:[%s4 + $0xe0] sm:$0xff]
      %v880 = vld [vmem:[%s4 + $0xe8] sm:$0xff]
      %v881 = vld [vmem:[%s4 + $0xf0] sm:$0xff]
      %v882 = vld [vmem:[%s4 + $0xf8] sm:$0xff]
      %v883 = vld [vmem:[%s3] sm:$0xff]
      %v884 = vld [vmem:[%s3 + $0x8] sm:$0xff]
      %v885 = vld [vmem:[%s3 + $0x10] sm:$0xff]
      %v886 = vld [vmem:[%s3 + $0x18] sm:$0xff]
      %887 = vmatprep.subr.mxu0 0.0
      %888 = vmatpush1.msra.mxu0 %v725
      %889 = vmatprep.subr.mxu0 0.0
      %890 = vmatpush1.msra.mxu0 %v728
      %891 = vmatprep.subr.mxu0 0.0
      %892 = vmatpush1.msra.mxu0 %v733
      %893 = vmatprep.subr.mxu0 0.0
      %894 = vmatpush1.msra.mxu0 %v736
      %895 = vmatprep.subr.mxu0 0.0
      %896 = vmatpush1.msra.mxu0 %v741
      %897 = vmatprep.subr.mxu0 0.0
      %898 = vmatpush1.msra.mxu0 %v744
      %899 = vmatprep.subr.mxu0 0.0
      %900 = vmatpush1.msra.mxu0 %v749
      %901 = vmatprep.subr.mxu0 0.0
      %902 = vmatpush1.msra.mxu0 %v752
      %903 = vmatprep.subr.mxu0 0.0
      %904 = vmatpush1.msra.mxu0 %v757
      %905 = vmatprep.subr.mxu0 0.0
      %906 = vmatpush1.msra.mxu0 %v760
      %907 = vmatprep.subr.mxu0 0.0
      %908 = vmatpush1.msra.mxu0 %v765
      %909 = vmatprep.subr.mxu0 0.0
      %910 = vmatpush1.msra.mxu0 %v768
      %911 = vmatprep.subr.mxu0 0.0
      %912 = vmatpush1.msra.mxu0 %v773
      %913 = vmatprep.subr.mxu0 0.0
      %914 = vmatpush1.msra.mxu0 %v776
      %915 = vmatprep.subr.mxu0 0.0
      %916 = vmatpush1.msra.mxu0 %v781
      %917 = vmatprep.subr.mxu0 0.0
      %918 = vmatpush1.msra.mxu0 %v784
      %919 = vmatprep.subr.mxu0 0.0
      %920 = vmatpush1.msra.mxu0 %v789
      %921 = vmatprep.subr.mxu0 0.0
      %922 = vmatpush1.msra.mxu0 %v792
      %923 = vmatprep.subr.mxu0 0.0
      %924 = vmatpush1.msra.mxu0 %v797
      %925 = vmatprep.subr.mxu0 0.0
      %926 = vmatpush1.msra.mxu0 %v800
      %927 = vmatprep.subr.mxu0 0.0
      %928 = vmatpush1.msra.mxu0 %v805
      %929 = vmatprep.subr.mxu0 0.0
      %930 = vmatpush1.msra.mxu0 %v808
      %931 = vmatprep.subr.mxu0 0.0
      %932 = vmatpush1.msra.mxu0 %v813
      %933 = vmatprep.subr.mxu0 0.0
      %934 = vmatpush1.msra.mxu0 %v816
      %935 = vmatprep.subr.mxu0 0.0
      %936 = vmatpush1.msra.mxu0 %v821
      %937 = vmatprep.subr.mxu0 0.0
      %938 = vmatpush1.msra.mxu0 %v824
      %939 = vmatprep.subr.mxu0 0.0
      %940 = vmatpush1.msra.mxu0 %v829
      %941 = vmatprep.subr.mxu0 0.0
      %942 = vmatpush1.msra.mxu0 %v832
      %943 = vmatprep.subr.mxu0 0.0
      %944 = vmatpush1.msra.mxu0 %v837
      %945 = vmatprep.subr.mxu0 0.0
      %946 = vmatpush1.msra.mxu0 %v840
      %947 = vmatprep.subr.mxu0 0.0
      %948 = vmatpush1.msra.mxu0 %v845
      %949 = vmatprep.subr.mxu0 0.0
      %950 = vmatpush1.msra.mxu0 %v848
      %951 = vmatprep.mubr.f32.mxu0 %v884
      %952 = vmatmul.mubr.f32.gmra.mrb[0].mxu0 %v883
      %v953 = vpop.f32.mrb[0].mxu0
      %v954 = vadd.f32 0.0, %v953
      %v955 = vpop.f32.mrb[0].mxu0
      %956 = vmatprep.mubr.f32.mxu0 %v886
      %957 = vmatmul.mubr.f32.gmra.mrb[0].mxu0 %v885
      %v958 = vpop.f32.mrb[0].mxu0
      %v959 = vadd.f32 0.0, %v958
      %v960 = vpop.f32.mrb[0].mxu0
      %961 = vdwg.mxu0
      %vm962 = vcmask 130048
      %v964 = vsel %vm962, %v851, 0
      %v967 = vsel %vm962, %v852, 0
      %v970 = vsel %vm962, %v853, 0
      %v973 = vsel %vm962, %v854, 0
      %v976 = vsel %vm962, %v855, 0
      %v979 = vsel %vm962, %v856, 0
      %v982 = vsel %vm962, %v857, 0
      %v985 = vsel %vm962, %v858, 0
      %v988 = vsel %vm962, %v859, 0
      %v991 = vsel %vm962, %v860, 0
      %v994 = vsel %vm962, %v861, 0
      %v997 = vsel %vm962, %v862, 0
      %v1000 = vsel %vm962, %v863, 0
      %v1003 = vsel %vm962, %v864, 0
      %v1006 = vsel %vm962, %v865, 0
      %v1009 = vsel %vm962, %v866, 0
      %v1012 = vsel %vm962, %v867, 0
      %v1015 = vsel %vm962, %v868, 0
      %v1018 = vsel %vm962, %v869, 0
      %v1021 = vsel %vm962, %v870, 0
      %v1024 = vsel %vm962, %v871, 0
      %v1027 = vsel %vm962, %v872, 0
      %v1030 = vsel %vm962, %v873, 0
      %v1033 = vsel %vm962, %v874, 0
      %v1036 = vsel %vm962, %v875, 0
      %v1039 = vsel %vm962, %v876, 0
      %v1042 = vsel %vm962, %v877, 0
      %v1045 = vsel %vm962, %v878, 0
      %v1048 = vsel %vm962, %v879, 0
      %v1051 = vsel %vm962, %v880, 0
      %v1054 = vsel %vm962, %v881, 0
      %v1057 = vsel %vm962, %v882, 0
      %1059 = vmatprep.subr.mxu0 0.0
      %1060 = vmatpush1.msra.mxu0 %v954
      %1061 = vmatprep.subr.mxu0 0.0
      %1062 = vmatpush1.msra.mxu0 %v959
      %1063 = vmatprep.subr.mxu0 0.0
      %1064 = vmatpush1.msra.mxu0 0.0
      %1065 = vmatprep.subr.mxu0 0.0
      %1066 = vmatpush1.msra.mxu0 0.0
      %1067 = vmatprep.subr.mxu0 0.0
      %1068 = vmatpush1.msra.mxu0 0.0
      %1069 = vmatprep.subr.mxu0 0.0
      %1070 = vmatpush1.msra.mxu0 0.0
      %1071 = vmatprep.subr.mxu0 0.0
      %1072 = vmatpush1.msra.mxu0 0.0
      %1073 = vmatprep.subr.mxu0 0.0
      %1074 = vmatpush1.msra.mxu0 0.0
      %1075 = vmatprep.subr.mxu0 0.0
      %1076 = vmatpush1.msra.mxu0 0.0
      %1077 = vmatprep.subr.mxu0 0.0
      %1078 = vmatpush1.msra.mxu0 0.0
      %1079 = vmatprep.subr.mxu0 0.0
      %1080 = vmatpush1.msra.mxu0 0.0
      %1081 = vmatprep.subr.mxu0 0.0
      %1082 = vmatpush1.msra.mxu0 0.0
      %1083 = vmatprep.subr.mxu0 0.0
      %1084 = vmatpush1.msra.mxu0 0.0
      %1085 = vmatprep.subr.mxu0 0.0
      %1086 = vmatpush1.msra.mxu0 0.0
      %1087 = vmatprep.subr.mxu0 0.0
      %1088 = vmatpush1.msra.mxu0 0.0
      %1089 = vmatprep.subr.mxu0 0.0
      %1090 = vmatpush1.msra.mxu0 0.0
      %1091 = vmatprep.subr.mxu0 0.0
      %1092 = vmatpush1.msra.mxu0 0.0
      %1093 = vmatprep.subr.mxu0 0.0
      %1094 = vmatpush1.msra.mxu0 0.0
      %1095 = vmatprep.subr.mxu0 0.0
      %1096 = vmatpush1.msra.mxu0 0.0
      %1097 = vmatprep.subr.mxu0 0.0
      %1098 = vmatpush1.msra.mxu0 0.0
      %1099 = vmatprep.subr.mxu0 0.0
      %1100 = vmatpush1.msra.mxu0 0.0
      %1101 = vmatprep.subr.mxu0 0.0
      %1102 = vmatpush1.msra.mxu0 0.0
      %1103 = vmatprep.subr.mxu0 0.0
      %1104 = vmatpush1.msra.mxu0 0.0
      %1105 = vmatprep.subr.mxu0 0.0
      %1106 = vmatpush1.msra.mxu0 0.0
      %1107 = vmatprep.subr.mxu0 0.0
      %1108 = vmatpush1.msra.mxu0 0.0
      %1109 = vmatprep.subr.mxu0 0.0
      %1110 = vmatpush1.msra.mxu0 0.0
      %1111 = vmatprep.subr.mxu0 0.0
      %1112 = vmatpush1.msra.mxu0 0.0
      %1113 = vmatprep.subr.mxu0 0.0
      %1114 = vmatpush1.msra.mxu0 0.0
      %1115 = vmatprep.subr.mxu0 0.0
      %1116 = vmatpush1.msra.mxu0 0.0
      %1117 = vmatprep.subr.mxu0 0.0
      %1118 = vmatpush1.msra.mxu0 0.0
      %1119 = vmatprep.subr.mxu0 0.0
      %1120 = vmatpush1.msra.mxu0 0.0
      %1121 = vmatprep.subr.mxu0 0.0
      %1122 = vmatpush1.msra.mxu0 0.0
      %1123 = vmatprep.mubr.f32.mxu0 0.0
      %1124 = vmatmul.mubr.f32.gmra.mrb[0].mxu0 %v964
      %v1125 = vpop.f32.mrb[0].mxu0
      %v1126 = vadd.f32 0.0, %v1125
      %v1127 = vpop.f32.mrb[0].mxu0
      %1128 = vmatprep.mubr.f32.mxu0 0.0
      %1129 = vmatmul.mubr.f32.gmra.mrb[0].mxu0 %v967
      %v1130 = vpop.f32.mrb[0].mxu0
      %v1131 = vadd.f32 0.0, %v1130
      %v1132 = vpop.f32.mrb[0].mxu0
      %1133 = vmatprep.mubr.f32.mxu0 0.0
      %1134 = vmatmul.mubr.f32.gmra.mrb[0].mxu0 %v970
      %v1135 = vpop.f32.mrb[0].mxu0
      %v1136 = vadd.f32 0.0, %v1135
      %v1137 = vpop.f32.mrb[0].mxu0
      %1138 = vmatprep.mubr.f32.mxu0 0.0
      %1139 = vmatmul.mubr.f32.gmra.mrb[0].mxu0 %v973
      %v1140 = vpop.f32.mrb[0].mxu0
      %v1141 = vadd.f32 0.0, %v1140
      %v1142 = vpop.f32.mrb[0].mxu0
      %1143 = vmatprep.mubr.f32.mxu0 0.0
      %1144 = vmatmul.mubr.f32.gmra.mrb[0].mxu0 %v976
      %v1145 = vpop.f32.mrb[0].mxu0
      %v1146 = vadd.f32 0.0, %v1145
      %v1147 = vpop.f32.mrb[0].mxu0
      %1148 = vmatprep.mubr.f32.mxu0 0.0
      %1149 = vmatmul.mubr.f32.gmra.mrb[0].mxu0 %v979
      %v1150 = vpop.f32.mrb[0].mxu0
      %v1151 = vadd.f32 0.0, %v1150
      %v1152 = vpop.f32.mrb[0].mxu0
      %1153 = vmatprep.mubr.f32.mxu0 0.0
      %1154 = vmatmul.mubr.f32.gmra.mrb[0].mxu0 %v982
      %v1155 = vpop.f32.mrb[0].mxu0
      %v1156 = vadd.f32 0.0, %v1155
      %v1157 = vpop.f32.mrb[0].mxu0
      %1158 = vmatprep.mubr.f32.mxu0 0.0
      %1159 = vmatmul.mubr.f32.gmra.mrb[0].mxu0 %v985
      %v1160 = vpop.f32.mrb[0].mxu0
      %v1161 = vadd.f32 0.0, %v1160
      %v1162 = vpop.f32.mrb[0].mxu0
      %1163 = vmatprep.mubr.f32.mxu0 0.0
      %1164 = vmatmul.mubr.f32.gmra.mrb[0].mxu0 %v988
      %v1165 = vpop.f32.mrb[0].mxu0
      %v1166 = vadd.f32 0.0, %v1165
      %v1167 = vpop.f32.mrb[0].mxu0
      %1168 = vmatprep.mubr.f32.mxu0 0.0
      %1169 = vmatmul.mubr.f32.gmra.mrb[0].mxu0 %v991
      %v1170 = vpop.f32.mrb[0].mxu0
      %v1171 = vadd.f32 0.0, %v1170
      %v1172 = vpop.f32.mrb[0].mxu0
      %1173 = vmatprep.mubr.f32.mxu0 0.0
      %1174 = vmatmul.mubr.f32.gmra.mrb[0].mxu0 %v994
      %v1175 = vpop.f32.mrb[0].mxu0
      %v1176 = vadd.f32 0.0, %v1175
      %v1177 = vpop.f32.mrb[0].mxu0
      %1178 = vmatprep.mubr.f32.mxu0 0.0
      %1179 = vmatmul.mubr.f32.gmra.mrb[0].mxu0 %v997
      %v1180 = vpop.f32.mrb[0].mxu0
      %v1181 = vadd.f32 0.0, %v1180
      %v1182 = vpop.f32.mrb[0].mxu0
      %1183 = vmatprep.mubr.f32.mxu0 0.0
      %1184 = vmatmul.mubr.f32.gmra.mrb[0].mxu0 %v1000
      %v1185 = vpop.f32.mrb[0].mxu0
      %v1186 = vadd.f32 0.0, %v1185
      %v1187 = vpop.f32.mrb[0].mxu0
      %1188 = vmatprep.mubr.f32.mxu0 0.0
      %1189 = vmatmul.mubr.f32.gmra.mrb[0].mxu0 %v1003
      %v1190 = vpop.f32.mrb[0].mxu0
      %v1191 = vadd.f32 0.0, %v1190
      %v1192 = vpop.f32.mrb[0].mxu0
      %1193 = vmatprep.mubr.f32.mxu0 0.0
      %1194 = vmatmul.mubr.f32.gmra.mrb[0].mxu0 %v1006
      %v1195 = vpop.f32.mrb[0].mxu0
      %v1196 = vadd.f32 0.0, %v1195
      %v1197 = vpop.f32.mrb[0].mxu0
      %1198 = vmatprep.mubr.f32.mxu0 0.0
      %1199 = vmatmul.mubr.f32.gmra.mrb[0].mxu0 %v1009
      %v1200 = vpop.f32.mrb[0].mxu0
      %v1201 = vadd.f32 0.0, %v1200
      %v1202 = vpop.f32.mrb[0].mxu0
      %1203 = vmatprep.mubr.f32.mxu0 0.0
      %1204 = vmatmul.mubr.f32.gmra.mrb[0].mxu0 %v1012
      %v1205 = vpop.f32.mrb[0].mxu0
      %v1206 = vadd.f32 0.0, %v1205
      %v1207 = vpop.f32.mrb[0].mxu0
      %1208 = vmatprep.mubr.f32.mxu0 0.0
      %1209 = vmatmul.mubr.f32.gmra.mrb[0].mxu0 %v1015
      %v1210 = vpop.f32.mrb[0].mxu0
      %v1211 = vadd.f32 0.0, %v1210
      %v1212 = vpop.f32.mrb[0].mxu0
      %1213 = vmatprep.mubr.f32.mxu0 0.0
      %1214 = vmatmul.mubr.f32.gmra.mrb[0].mxu0 %v1018
      %v1215 = vpop.f32.mrb[0].mxu0
      %v1216 = vadd.f32 0.0, %v1215
      %v1217 = vpop.f32.mrb[0].mxu0
      %1218 = vmatprep.mubr.f32.mxu0 0.0
      %1219 = vmatmul.mubr.f32.gmra.mrb[0].mxu0 %v1021
      %v1220 = vpop.f32.mrb[0].mxu0
      %v1221 = vadd.f32 0.0, %v1220
      %v1222 = vpop.f32.mrb[0].mxu0
      %1223 = vmatprep.mubr.f32.mxu0 0.0
      %1224 = vmatmul.mubr.f32.gmra.mrb[0].mxu0 %v1024
      %v1225 = vpop.f32.mrb[0].mxu0
      %v1226 = vadd.f32 0.0, %v1225
      %v1227 = vpop.f32.mrb[0].mxu0
      %1228 = vmatprep.mubr.f32.mxu0 0.0
      %1229 = vmatmul.mubr.f32.gmra.mrb[0].mxu0 %v1027
      %v1230 = vpop.f32.mrb[0].mxu0
      %v1231 = vadd.f32 0.0, %v1230
      %v1232 = vpop.f32.mrb[0].mxu0
      %1233 = vmatprep.mubr.f32.mxu0 0.0
      %1234 = vmatmul.mubr.f32.gmra.mrb[0].mxu0 %v1030
      %v1235 = vpop.f32.mrb[0].mxu0
      %v1236 = vadd.f32 0.0, %v1235
      %v1237 = vpop.f32.mrb[0].mxu0
      %1238 = vmatprep.mubr.f32.mxu0 0.0
      %1239 = vmatmul.mubr.f32.gmra.mrb[0].mxu0 %v1033
      %v1240 = vpop.f32.mrb[0].mxu0
      %v1241 = vadd.f32 0.0, %v1240
      %v1242 = vpop.f32.mrb[0].mxu0
      %1243 = vmatprep.mubr.f32.mxu0 0.0
      %1244 = vmatmul.mubr.f32.gmra.mrb[0].mxu0 %v1036
      %v1245 = vpop.f32.mrb[0].mxu0
      %v1246 = vadd.f32 0.0, %v1245
      %v1247 = vpop.f32.mrb[0].mxu0
      %1248 = vmatprep.mubr.f32.mxu0 0.0
      %1249 = vmatmul.mubr.f32.gmra.mrb[0].mxu0 %v1039
      %v1250 = vpop.f32.mrb[0].mxu0
      %v1251 = vadd.f32 0.0, %v1250
      %v1252 = vpop.f32.mrb[0].mxu0
      %1253 = vmatprep.mubr.f32.mxu0 0.0
      %1254 = vmatmul.mubr.f32.gmra.mrb[0].mxu0 %v1042
      %v1255 = vpop.f32.mrb[0].mxu0
      %v1256 = vadd.f32 0.0, %v1255
      %v1257 = vpop.f32.mrb[0].mxu0
      %1258 = vmatprep.mubr.f32.mxu0 0.0
      %1259 = vmatmul.mubr.f32.gmra.mrb[0].mxu0 %v1045
      %v1260 = vpop.f32.mrb[0].mxu0
      %v1261 = vadd.f32 0.0, %v1260
      %v1262 = vpop.f32.mrb[0].mxu0
      %1263 = vmatprep.mubr.f32.mxu0 0.0
      %1264 = vmatmul.mubr.f32.gmra.mrb[0].mxu0 %v1048
      %v1265 = vpop.f32.mrb[0].mxu0
      %v1266 = vadd.f32 0.0, %v1265
      %v1267 = vpop.f32.mrb[0].mxu0
      %1268 = vmatprep.mubr.f32.mxu0 0.0
      %1269 = vmatmul.mubr.f32.gmra.mrb[0].mxu0 %v1051
      %v1270 = vpop.f32.mrb[0].mxu0
      %v1271 = vadd.f32 0.0, %v1270
      %v1272 = vpop.f32.mrb[0].mxu0
      %1273 = vmatprep.mubr.f32.mxu0 0.0
      %1274 = vmatmul.mubr.f32.gmra.mrb[0].mxu0 %v1054
      %v1275 = vpop.f32.mrb[0].mxu0
      %v1276 = vadd.f32 0.0, %v1275
      %v1277 = vpop.f32.mrb[0].mxu0
      %1278 = vmatprep.mubr.f32.mxu0 0.0
      %1279 = vmatmul.mubr.f32.gmra.mrb[0].mxu0 %v1057
      %v1280 = vpop.f32.mrb[0].mxu0
      %v1281 = vadd.f32 0.0, %v1280
      %v1282 = vpop.f32.mrb[0].mxu0
      %1283 = vdwg.mxu0
      %v1284 = vsel %vm962, %v1126, 0.0
      %1285 = vadd.xlane.f32.xlu0 %v1284
      %v1286 = vpop.xlane.xlu0 %1285
      %v1287 = vsel %vm962, %v1131, 0.0
      %1288 = vadd.xlane.f32.xlu0 %v1287
      %v1289 = vpop.xlane.xlu0 %1288
      %v1290 = vsel %vm962, %v1136, 0.0
      %1291 = vadd.xlane.f32.xlu0 %v1290
      %v1292 = vpop.xlane.xlu0 %1291
      %v1293 = vsel %vm962, %v1141, 0.0
      %1294 = vadd.xlane.f32.xlu0 %v1293
      %v1295 = vpop.xlane.xlu0 %1294
      %v1296 = vsel %vm962, %v1146, 0.0
      %1297 = vadd.xlane.f32.xlu0 %v1296
      %v1298 = vpop.xlane.xlu0 %1297
      %v1299 = vsel %vm962, %v1151, 0.0
      %1300 = vadd.xlane.f32.xlu0 %v1299
      %v1301 = vpop.xlane.xlu0 %1300
      %v1302 = vsel %vm962, %v1156, 0.0
      %1303 = vadd.xlane.f32.xlu0 %v1302
      %v1304 = vpop.xlane.xlu0 %1303
      %v1305 = vsel %vm962, %v1161, 0.0
      %1306 = vadd.xlane.f32.xlu0 %v1305
      %v1307 = vpop.xlane.xlu0 %1306
      %v1308 = vsel %vm962, %v1166, 0.0
      %1309 = vadd.xlane.f32.xlu0 %v1308
      %v1310 = vpop.xlane.xlu0 %1309
      %v1311 = vsel %vm962, %v1171, 0.0
      %1312 = vadd.xlane.f32.xlu0 %v1311
      %v1313 = vpop.xlane.xlu0 %1312
      %v1314 = vsel %vm962, %v1176, 0.0
      %1315 = vadd.xlane.f32.xlu0 %v1314
      %v1316 = vpop.xlane.xlu0 %1315
      %v1317 = vsel %vm962, %v1181, 0.0
      %1318 = vadd.xlane.f32.xlu0 %v1317
      %v1319 = vpop.xlane.xlu0 %1318
      %v1320 = vsel %vm962, %v1186, 0.0
      %1321 = vadd.xlane.f32.xlu0 %v1320
      %v1322 = vpop.xlane.xlu0 %1321
      %v1323 = vsel %vm962, %v1191, 0.0
      %1324 = vadd.xlane.f32.xlu0 %v1323
      %v1325 = vpop.xlane.xlu0 %1324
      %v1326 = vsel %vm962, %v1196, 0.0
      %1327 = vadd.xlane.f32.xlu0 %v1326
      %v1328 = vpop.xlane.xlu0 %1327
      %v1329 = vsel %vm962, %v1201, 0.0
      %1330 = vadd.xlane.f32.xlu0 %v1329
      %v1331 = vpop.xlane.xlu0 %1330
      %v1332 = vsel %vm962, %v1206, 0.0
      %1333 = vadd.xlane.f32.xlu0 %v1332
      %v1334 = vpop.xlane.xlu0 %1333
      %v1335 = vsel %vm962, %v1211, 0.0
      %1336 = vadd.xlane.f32.xlu0 %v1335
      %v1337 = vpop.xlane.xlu0 %1336
      %v1338 = vsel %vm962, %v1216, 0.0
      %1339 = vadd.xlane.f32.xlu0 %v1338
      %v1340 = vpop.xlane.xlu0 %1339
      %v1341 = vsel %vm962, %v1221, 0.0
      %1342 = vadd.xlane.f32.xlu0 %v1341
      %v1343 = vpop.xlane.xlu0 %1342
      %v1344 = vsel %vm962, %v1226, 0.0
      %1345 = vadd.xlane.f32.xlu0 %v1344
      %v1346 = vpop.xlane.xlu0 %1345
      %v1347 = vsel %vm962, %v1231, 0.0
      %1348 = vadd.xlane.f32.xlu0 %v1347
      %v1349 = vpop.xlane.xlu0 %1348
      %v1350 = vsel %vm962, %v1236, 0.0
      %1351 = vadd.xlane.f32.xlu0 %v1350
      %v1352 = vpop.xlane.xlu0 %1351
      %v1353 = vsel %vm962, %v1241, 0.0
      %1354 = vadd.xlane.f32.xlu0 %v1353
      %v1355 = vpop.xlane.xlu0 %1354
      %v1356 = vsel %vm962, %v1246, 0.0
      %1357 = vadd.xlane.f32.xlu0 %v1356
      %v1358 = vpop.xlane.xlu0 %1357
      %v1359 = vsel %vm962, %v1251, 0.0
      %1360 = vadd.xlane.f32.xlu0 %v1359
      %v1361 = vpop.xlane.xlu0 %1360
      %v1362 = vsel %vm962, %v1256, 0.0
      %1363 = vadd.xlane.f32.xlu0 %v1362
      %v1364 = vpop.xlane.xlu0 %1363
      %v1365 = vsel %vm962, %v1261, 0.0
      %1366 = vadd.xlane.f32.xlu0 %v1365
      %v1367 = vpop.xlane.xlu0 %1366
      %v1368 = vsel %vm962, %v1266, 0.0
      %1369 = vadd.xlane.f32.xlu0 %v1368
      %v1370 = vpop.xlane.xlu0 %1369
      %v1371 = vsel %vm962, %v1271, 0.0
      %1372 = vadd.xlane.f32.xlu0 %v1371
      %v1373 = vpop.xlane.xlu0 %1372
      %v1374 = vsel %vm962, %v1276, 0.0
      %1375 = vadd.xlane.f32.xlu0 %v1374
      %v1376 = vpop.xlane.xlu0 %1375
      %v1377 = vsel %vm962, %v1281, 0.0
      %1378 = vadd.xlane.f32.xlu0 %v1377
      %v1379 = vpop.xlane.xlu0 %1378
      %v1380 = vrcp.pop 256.0
      %v1381 = vmul.f32 %v1286, %v1380
      %v1382 = vmul.f32 %v1289, %v1380
      %v1383 = vmul.f32 %v1292, %v1380
      %v1384 = vmul.f32 %v1295, %v1380
      %v1385 = vmul.f32 %v1298, %v1380
      %v1386 = vmul.f32 %v1301, %v1380
      %v1387 = vmul.f32 %v1304, %v1380
      %v1388 = vmul.f32 %v1307, %v1380
      %v1389 = vmul.f32 %v1310, %v1380
      %v1390 = vmul.f32 %v1313, %v1380
      %v1391 = vmul.f32 %v1316, %v1380
      %v1392 = vmul.f32 %v1319, %v1380
      %v1393 = vmul.f32 %v1322, %v1380
      %v1394 = vmul.f32 %v1325, %v1380
      %v1395 = vmul.f32 %v1328, %v1380
      %v1396 = vmul.f32 %v1331, %v1380
      %v1397 = vmul.f32 %v1334, %v1380
      %v1398 = vmul.f32 %v1337, %v1380
      %v1399 = vmul.f32 %v1340, %v1380
      %v1400 = vmul.f32 %v1343, %v1380
      %v1401 = vmul.f32 %v1346, %v1380
      %v1402 = vmul.f32 %v1349, %v1380
      %v1403 = vmul.f32 %v1352, %v1380
      %v1404 = vmul.f32 %v1355, %v1380
      %v1405 = vmul.f32 %v1358, %v1380
      %v1406 = vmul.f32 %v1361, %v1380
      %v1407 = vmul.f32 %v1364, %v1380
      %v1408 = vmul.f32 %v1367, %v1380
      %v1409 = vmul.f32 %v1370, %v1380
      %v1410 = vmul.f32 %v1373, %v1380
      %v1411 = vmul.f32 %v1376, %v1380
      %v1412 = vmul.f32 %v1379, %v1380
      %v1413 = vsub.f32 %v725, %v1381
      %v1414 = vsub.f32 %v728, %v1382
      %v1415 = vsub.f32 %v733, %v1383
      %v1416 = vsub.f32 %v736, %v1384
      %v1417 = vsub.f32 %v741, %v1385
      %v1418 = vsub.f32 %v744, %v1386
      %v1419 = vsub.f32 %v749, %v1387
      %v1420 = vsub.f32 %v752, %v1388
      %v1421 = vsub.f32 %v757, %v1389
      %v1422 = vsub.f32 %v760, %v1390
      %v1423 = vsub.f32 %v765, %v1391
      %v1424 = vsub.f32 %v768, %v1392
      %v1425 = vsub.f32 %v773, %v1393
      %v1426 = vsub.f32 %v776, %v1394
      %v1427 = vsub.f32 %v781, %v1395
      %v1428 = vsub.f32 %v784, %v1396
      %v1429 = vsub.f32 %v789, %v1397
      %v1430 = vsub.f32 %v792, %v1398
      %v1431 = vsub.f32 %v797, %v1399
      %v1432 = vsub.f32 %v800, %v1400
      %v1433 = vsub.f32 %v805, %v1401
      %v1434 = vsub.f32 %v808, %v1402
      %v1435 = vsub.f32 %v813, %v1403
      %v1436 = vsub.f32 %v816, %v1404
      %v1437 = vsub.f32 %v821, %v1405
      %v1438 = vsub.f32 %v824, %v1406
      %v1439 = vsub.f32 %v829, %v1407
      %v1440 = vsub.f32 %v832, %v1408
      %v1441 = vsub.f32 %v837, %v1409
      %v1442 = vsub.f32 %v840, %v1410
      %v1443 = vsub.f32 %v845, %v1411
      %v1444 = vsub.f32 %v848, %v1412
      %v1445 = vmul.f32 %v1413, %v1413
      %v1446 = vmul.f32 %v1414, %v1414
      %v1447 = vmul.f32 %v1415, %v1415
      %v1448 = vmul.f32 %v1416, %v1416
      %v1449 = vmul.f32 %v1417, %v1417
      %v1450 = vmul.f32 %v1418, %v1418
      %v1451 = vmul.f32 %v1419, %v1419
      %v1452 = vmul.f32 %v1420, %v1420
      %v1453 = vmul.f32 %v1421, %v1421
      %v1454 = vmul.f32 %v1422, %v1422
      %v1455 = vmul.f32 %v1423, %v1423
      %v1456 = vmul.f32 %v1424, %v1424
      %v1457 = vmul.f32 %v1425, %v1425
      %v1458 = vmul.f32 %v1426, %v1426
      %v1459 = vmul.f32 %v1427, %v1427
      %v1460 = vmul.f32 %v1428, %v1428
      %v1461 = vmul.f32 %v1429, %v1429
      %v1462 = vmul.f32 %v1430, %v1430
      %v1463 = vmul.f32 %v1431, %v1431
      %v1464 = vmul.f32 %v1432, %v1432
      %v1465 = vmul.f32 %v1433, %v1433
      %v1466 = vmul.f32 %v1434, %v1434
      %v1467 = vmul.f32 %v1435, %v1435
      %v1468 = vmul.f32 %v1436, %v1436
      %v1469 = vmul.f32 %v1437, %v1437
      %v1470 = vmul.f32 %v1438, %v1438
      %v1471 = vmul.f32 %v1439, %v1439
      %v1472 = vmul.f32 %v1440, %v1440
      %v1473 = vmul.f32 %v1441, %v1441
      %v1474 = vmul.f32 %v1442, %v1442
      %v1475 = vmul.f32 %v1443, %v1443
      %v1476 = vmul.f32 %v1444, %v1444
      %1477 = vmatprep.subr.mxu0 0.0
      %1478 = vmatpush1.msra.mxu0 %v1445
      %1479 = vmatprep.subr.mxu0 0.0
      %1480 = vmatpush1.msra.mxu0 %v1446
      %1481 = vmatprep.subr.mxu0 0.0
      %1482 = vmatpush1.msra.mxu0 %v1447
      %1483 = vmatprep.subr.mxu0 0.0
      %1484 = vmatpush1.msra.mxu0 %v1448
      %1485 = vmatprep.subr.mxu0 0.0
      %1486 = vmatpush1.msra.mxu0 %v1449
      %1487 = vmatprep.subr.mxu0 0.0
      %1488 = vmatpush1.msra.mxu0 %v1450
      %1489 = vmatprep.subr.mxu0 0.0
      %1490 = vmatpush1.msra.mxu0 %v1451
      %1491 = vmatprep.subr.mxu0 0.0
      %1492 = vmatpush1.msra.mxu0 %v1452
      %1493 = vmatprep.subr.mxu0 0.0
      %1494 = vmatpush1.msra.mxu0 %v1453
      %1495 = vmatprep.subr.mxu0 0.0
      %1496 = vmatpush1.msra.mxu0 %v1454
      %1497 = vmatprep.subr.mxu0 0.0
      %1498 = vmatpush1.msra.mxu0 %v1455
      %1499 = vmatprep.subr.mxu0 0.0
      %1500 = vmatpush1.msra.mxu0 %v1456
      %1501 = vmatprep.subr.mxu0 0.0
      %1502 = vmatpush1.msra.mxu0 %v1457
      %1503 = vmatprep.subr.mxu0 0.0
      %1504 = vmatpush1.msra.mxu0 %v1458
      %1505 = vmatprep.subr.mxu0 0.0
      %1506 = vmatpush1.msra.mxu0 %v1459
      %1507 = vmatprep.subr.mxu0 0.0
      %1508 = vmatpush1.msra.mxu0 %v1460
      %1509 = vmatprep.subr.mxu0 0.0
      %1510 = vmatpush1.msra.mxu0 %v1461
      %1511 = vmatprep.subr.mxu0 0.0
      %1512 = vmatpush1.msra.mxu0 %v1462
      %1513 = vmatprep.subr.mxu0 0.0
      %1514 = vmatpush1.msra.mxu0 %v1463
      %1515 = vmatprep.subr.mxu0 0.0
      %1516 = vmatpush1.msra.mxu0 %v1464
      %1517 = vmatprep.subr.mxu0 0.0
      %1518 = vmatpush1.msra.mxu0 %v1465
      %1519 = vmatprep.subr.mxu0 0.0
      %1520 = vmatpush1.msra.mxu0 %v1466
      %1521 = vmatprep.subr.mxu0 0.0
      %1522 = vmatpush1.msra.mxu0 %v1467
      %1523 = vmatprep.subr.mxu0 0.0
      %1524 = vmatpush1.msra.mxu0 %v1468
      %1525 = vmatprep.subr.mxu0 0.0
      %1526 = vmatpush1.msra.mxu0 %v1469
      %1527 = vmatprep.subr.mxu0 0.0
      %1528 = vmatpush1.msra.mxu0 %v1470
      %1529 = vmatprep.subr.mxu0 0.0
      %1530 = vmatpush1.msra.mxu0 %v1471
      %1531 = vmatprep.subr.mxu0 0.0
      %1532 = vmatpush1.msra.mxu0 %v1472
      %1533 = vmatprep.subr.mxu0 0.0
      %1534 = vmatpush1.msra.mxu0 %v1473
      %1535 = vmatprep.subr.mxu0 0.0
      %1536 = vmatpush1.msra.mxu0 %v1474
      %1537 = vmatprep.subr.mxu0 0.0
      %1538 = vmatpush1.msra.mxu0 %v1475
      %1539 = vmatprep.subr.mxu0 0.0
      %1540 = vmatpush1.msra.mxu0 %v1476
      %1541 = vmatprep.mubr.f32.mxu0 %v884
      %1542 = vmatmul.mubr.f32.gmra.mrb[0].mxu0 %v883
      %v1543 = vpop.f32.mrb[0].mxu0
      %v1544 = vadd.f32 0.0, %v1543
      %v1545 = vpop.f32.mrb[0].mxu0
      %1546 = vmatprep.mubr.f32.mxu0 %v886
      %1547 = vmatmul.mubr.f32.gmra.mrb[0].mxu0 %v885
      %v1548 = vpop.f32.mrb[0].mxu0
      %v1549 = vadd.f32 0.0, %v1548
      %v1550 = vpop.f32.mrb[0].mxu0
      %1551 = vdwg.mxu0
      %1552 = vmatprep.subr.mxu0 0.0
      %1553 = vmatpush1.msra.mxu0 %v1544
      %1554 = vmatprep.subr.mxu0 0.0
      %1555 = vmatpush1.msra.mxu0 %v1549
      %1556 = vmatprep.subr.mxu0 0.0
      %1557 = vmatpush1.msra.mxu0 0.0
      %1558 = vmatprep.subr.mxu0 0.0
      %1559 = vmatpush1.msra.mxu0 0.0
      %1560 = vmatprep.subr.mxu0 0.0
      %1561 = vmatpush1.msra.mxu0 0.0
      %1562 = vmatprep.subr.mxu0 0.0
      %1563 = vmatpush1.msra.mxu0 0.0
      %1564 = vmatprep.subr.mxu0 0.0
      %1565 = vmatpush1.msra.mxu0 0.0
      %1566 = vmatprep.subr.mxu0 0.0
      %1567 = vmatpush1.msra.mxu0 0.0
      %1568 = vmatprep.subr.mxu0 0.0
      %1569 = vmatpush1.msra.mxu0 0.0
      %1570 = vmatprep.subr.mxu0 0.0
      %1571 = vmatpush1.msra.mxu0 0.0
      %1572 = vmatprep.subr.mxu0 0.0
      %1573 = vmatpush1.msra.mxu0 0.0
      %1574 = vmatprep.subr.mxu0 0.0
      %1575 = vmatpush1.msra.mxu0 0.0
      %1576 = vmatprep.subr.mxu0 0.0
      %1577 = vmatpush1.msra.mxu0 0.0
      %1578 = vmatprep.subr.mxu0 0.0
      %1579 = vmatpush1.msra.mxu0 0.0
      %1580 = vmatprep.subr.mxu0 0.0
      %1581 = vmatpush1.msra.mxu0 0.0
      %1582 = vmatprep.subr.mxu0 0.0
      %1583 = vmatpush1.msra.mxu0 0.0
      %1584 = vmatprep.subr.mxu0 0.0
      %1585 = vmatpush1.msra.mxu0 0.0
      %1586 = vmatprep.subr.mxu0 0.0
      %1587 = vmatpush1.msra.mxu0 0.0
      %1588 = vmatprep.subr.mxu0 0.0
      %1589 = vmatpush1.msra.mxu0 0.0
      %1590 = vmatprep.subr.mxu0 0.0
      %1591 = vmatpush1.msra.mxu0 0.0
      %1592 = vmatprep.subr.mxu0 0.0
      %1593 = vmatpush1.msra.mxu0 0.0
      %1594 = vmatprep.subr.mxu0 0.0
      %1595 = vmatpush1.msra.mxu0 0.0
      %1596 = vmatprep.subr.mxu0 0.0
      %1597 = vmatpush1.msra.mxu0 0.0
      %1598 = vmatprep.subr.mxu0 0.0
      %1599 = vmatpush1.msra.mxu0 0.0
      %1600 = vmatprep.subr.mxu0 0.0
      %1601 = vmatpush1.msra.mxu0 0.0
      %1602 = vmatprep.subr.mxu0 0.0
      %1603 = vmatpush1.msra.mxu0 0.0
      %1604 = vmatprep.subr.mxu0 0.0
      %1605 = vmatpush1.msra.mxu0 0.0
      %1606 = vmatprep.subr.mxu0 0.0
      %1607 = vmatpush1.msra.mxu0 0.0
      %1608 = vmatprep.subr.mxu0 0.0
      %1609 = vmatpush1.msra.mxu0 0.0
      %1610 = vmatprep.subr.mxu0 0.0
      %1611 = vmatpush1.msra.mxu0 0.0
      %1612 = vmatprep.subr.mxu0 0.0
      %1613 = vmatpush1.msra.mxu0 0.0
      %1614 = vmatprep.subr.mxu0 0.0
      %1615 = vmatpush1.msra.mxu0 0.0
      %1616 = vmatprep.mubr.f32.mxu0 0.0
      %1617 = vmatmul.mubr.f32.gmra.mrb[0].mxu0 %v964
      %v1618 = vpop.f32.mrb[0].mxu0
      %v1619 = vadd.f32 0.0, %v1618
      %v1620 = vpop.f32.mrb[0].mxu0
      %1621 = vmatprep.mubr.f32.mxu0 0.0
      %1622 = vmatmul.mubr.f32.gmra.mrb[0].mxu0 %v967
      %v1623 = vpop.f32.mrb[0].mxu0
      %v1624 = vadd.f32 0.0, %v1623
      %v1625 = vpop.f32.mrb[0].mxu0
      %1626 = vmatprep.mubr.f32.mxu0 0.0
      %1627 = vmatmul.mubr.f32.gmra.mrb[0].mxu0 %v970
      %v1628 = vpop.f32.mrb[0].mxu0
      %v1629 = vadd.f32 0.0, %v1628
      %v1630 = vpop.f32.mrb[0].mxu0
      %1631 = vmatprep.mubr.f32.mxu0 0.0
      %1632 = vmatmul.mubr.f32.gmra.mrb[0].mxu0 %v973
      %v1633 = vpop.f32.mrb[0].mxu0
      %v1634 = vadd.f32 0.0, %v1633
      %v1635 = vpop.f32.mrb[0].mxu0
      %1636 = vmatprep.mubr.f32.mxu0 0.0
      %1637 = vmatmul.mubr.f32.gmra.mrb[0].mxu0 %v976
      %v1638 = vpop.f32.mrb[0].mxu0
      %v1639 = vadd.f32 0.0, %v1638
      %v1640 = vpop.f32.mrb[0].mxu0
      %1641 = vmatprep.mubr.f32.mxu0 0.0
      %1642 = vmatmul.mubr.f32.gmra.mrb[0].mxu0 %v979
      %v1643 = vpop.f32.mrb[0].mxu0
      %v1644 = vadd.f32 0.0, %v1643
      %v1645 = vpop.f32.mrb[0].mxu0
      %1646 = vmatprep.mubr.f32.mxu0 0.0
      %1647 = vmatmul.mubr.f32.gmra.mrb[0].mxu0 %v982
      %v1648 = vpop.f32.mrb[0].mxu0
      %v1649 = vadd.f32 0.0, %v1648
      %v1650 = vpop.f32.mrb[0].mxu0
      %1651 = vmatprep.mubr.f32.mxu0 0.0
      %1652 = vmatmul.mubr.f32.gmra.mrb[0].mxu0 %v985
      %v1653 = vpop.f32.mrb[0].mxu0
      %v1654 = vadd.f32 0.0, %v1653
      %v1655 = vpop.f32.mrb[0].mxu0
      %1656 = vmatprep.mubr.f32.mxu0 0.0
      %1657 = vmatmul.mubr.f32.gmra.mrb[0].mxu0 %v988
      %v1658 = vpop.f32.mrb[0].mxu0
      %v1659 = vadd.f32 0.0, %v1658
      %v1660 = vpop.f32.mrb[0].mxu0
      %1661 = vmatprep.mubr.f32.mxu0 0.0
      %1662 = vmatmul.mubr.f32.gmra.mrb[0].mxu0 %v991
      %v1663 = vpop.f32.mrb[0].mxu0
      %v1664 = vadd.f32 0.0, %v1663
      %v1665 = vpop.f32.mrb[0].mxu0
      %1666 = vmatprep.mubr.f32.mxu0 0.0
      %1667 = vmatmul.mubr.f32.gmra.mrb[0].mxu0 %v994
      %v1668 = vpop.f32.mrb[0].mxu0
      %v1669 = vadd.f32 0.0, %v1668
      %v1670 = vpop.f32.mrb[0].mxu0
      %1671 = vmatprep.mubr.f32.mxu0 0.0
      %1672 = vmatmul.mubr.f32.gmra.mrb[0].mxu0 %v997
      %v1673 = vpop.f32.mrb[0].mxu0
      %v1674 = vadd.f32 0.0, %v1673
      %v1675 = vpop.f32.mrb[0].mxu0
      %1676 = vmatprep.mubr.f32.mxu0 0.0
      %1677 = vmatmul.mubr.f32.gmra.mrb[0].mxu0 %v1000
      %v1678 = vpop.f32.mrb[0].mxu0
      %v1679 = vadd.f32 0.0, %v1678
      %v1680 = vpop.f32.mrb[0].mxu0
      %1681 = vmatprep.mubr.f32.mxu0 0.0
      %1682 = vmatmul.mubr.f32.gmra.mrb[0].mxu0 %v1003
      %v1683 = vpop.f32.mrb[0].mxu0
      %v1684 = vadd.f32 0.0, %v1683
      %v1685 = vpop.f32.mrb[0].mxu0
      %1686 = vmatprep.mubr.f32.mxu0 0.0
      %1687 = vmatmul.mubr.f32.gmra.mrb[0].mxu0 %v1006
      %v1688 = vpop.f32.mrb[0].mxu0
      %v1689 = vadd.f32 0.0, %v1688
      %v1690 = vpop.f32.mrb[0].mxu0
      %1691 = vmatprep.mubr.f32.mxu0 0.0
      %1692 = vmatmul.mubr.f32.gmra.mrb[0].mxu0 %v1009
      %v1693 = vpop.f32.mrb[0].mxu0
      %v1694 = vadd.f32 0.0, %v1693
      %v1695 = vpop.f32.mrb[0].mxu0
      %1696 = vmatprep.mubr.f32.mxu0 0.0
      %1697 = vmatmul.mubr.f32.gmra.mrb[0].mxu0 %v1012
      %v1698 = vpop.f32.mrb[0].mxu0
      %v1699 = vadd.f32 0.0, %v1698
      %v1700 = vpop.f32.mrb[0].mxu0
      %1701 = vmatprep.mubr.f32.mxu0 0.0
      %1702 = vmatmul.mubr.f32.gmra.mrb[0].mxu0 %v1015
      %v1703 = vpop.f32.mrb[0].mxu0
      %v1704 = vadd.f32 0.0, %v1703
      %v1705 = vpop.f32.mrb[0].mxu0
      %1706 = vmatprep.mubr.f32.mxu0 0.0
      %1707 = vmatmul.mubr.f32.gmra.mrb[0].mxu0 %v1018
      %v1708 = vpop.f32.mrb[0].mxu0
      %v1709 = vadd.f32 0.0, %v1708
      %v1710 = vpop.f32.mrb[0].mxu0
      %1711 = vmatprep.mubr.f32.mxu0 0.0
      %1712 = vmatmul.mubr.f32.gmra.mrb[0].mxu0 %v1021
      %v1713 = vpop.f32.mrb[0].mxu0
      %v1714 = vadd.f32 0.0, %v1713
      %v1715 = vpop.f32.mrb[0].mxu0
      %1716 = vmatprep.mubr.f32.mxu0 0.0
      %1717 = vmatmul.mubr.f32.gmra.mrb[0].mxu0 %v1024
      %v1718 = vpop.f32.mrb[0].mxu0
      %v1719 = vadd.f32 0.0, %v1718
      %v1720 = vpop.f32.mrb[0].mxu0
      %1721 = vmatprep.mubr.f32.mxu0 0.0
      %1722 = vmatmul.mubr.f32.gmra.mrb[0].mxu0 %v1027
      %v1723 = vpop.f32.mrb[0].mxu0
      %v1724 = vadd.f32 0.0, %v1723
      %v1725 = vpop.f32.mrb[0].mxu0
      %1726 = vmatprep.mubr.f32.mxu0 0.0
      %1727 = vmatmul.mubr.f32.gmra.mrb[0].mxu0 %v1030
      %v1728 = vpop.f32.mrb[0].mxu0
      %v1729 = vadd.f32 0.0, %v1728
      %v1730 = vpop.f32.mrb[0].mxu0
      %1731 = vmatprep.mubr.f32.mxu0 0.0
      %1732 = vmatmul.mubr.f32.gmra.mrb[0].mxu0 %v1033
      %v1733 = vpop.f32.mrb[0].mxu0
      %v1734 = vadd.f32 0.0, %v1733
      %v1735 = vpop.f32.mrb[0].mxu0
      %1736 = vmatprep.mubr.f32.mxu0 0.0
      %1737 = vmatmul.mubr.f32.gmra.mrb[0].mxu0 %v1036
      %v1738 = vpop.f32.mrb[0].mxu0
      %v1739 = vadd.f32 0.0, %v1738
      %v1740 = vpop.f32.mrb[0].mxu0
      %1741 = vmatprep.mubr.f32.mxu0 0.0
      %1742 = vmatmul.mubr.f32.gmra.mrb[0].mxu0 %v1039
      %v1743 = vpop.f32.mrb[0].mxu0
      %v1744 = vadd.f32 0.0, %v1743
      %v1745 = vpop.f32.mrb[0].mxu0
      %1746 = vmatprep.mubr.f32.mxu0 0.0
      %1747 = vmatmul.mubr.f32.gmra.mrb[0].mxu0 %v1042
      %v1748 = vpop.f32.mrb[0].mxu0
      %v1749 = vadd.f32 0.0, %v1748
      %v1750 = vpop.f32.mrb[0].mxu0
      %1751 = vmatprep.mubr.f32.mxu0 0.0
      %1752 = vmatmul.mubr.f32.gmra.mrb[0].mxu0 %v1045
      %v1753 = vpop.f32.mrb[0].mxu0
      %v1754 = vadd.f32 0.0, %v1753
      %v1755 = vpop.f32.mrb[0].mxu0
      %1756 = vmatprep.mubr.f32.mxu0 0.0
      %1757 = vmatmul.mubr.f32.gmra.mrb[0].mxu0 %v1048
      %v1758 = vpop.f32.mrb[0].mxu0
      %v1759 = vadd.f32 0.0, %v1758
      %v1760 = vpop.f32.mrb[0].mxu0
      %1761 = vmatprep.mubr.f32.mxu0 0.0
      %1762 = vmatmul.mubr.f32.gmra.mrb[0].mxu0 %v1051
      %v1763 = vpop.f32.mrb[0].mxu0
      %v1764 = vadd.f32 0.0, %v1763
      %v1765 = vpop.f32.mrb[0].mxu0
      %1766 = vmatprep.mubr.f32.mxu0 0.0
      %1767 = vmatmul.mubr.f32.gmra.mrb[0].mxu0 %v1054
      %v1768 = vpop.f32.mrb[0].mxu0
      %v1769 = vadd.f32 0.0, %v1768
      %v1770 = vpop.f32.mrb[0].mxu0
      %1771 = vmatprep.mubr.f32.mxu0 0.0
      %1772 = vmatmul.mubr.f32.gmra.mrb[0].mxu0 %v1057
      %v1773 = vpop.f32.mrb[0].mxu0
      %v1774 = vadd.f32 0.0, %v1773
      %v1775 = vpop.f32.mrb[0].mxu0
      %1776 = vdwg.mxu0
      %v1777 = vsel %vm962, %v1619, 0.0
      %1778 = vadd.xlane.f32.xlu0 %v1777
      %v1779 = vpop.xlane.xlu0 %1778
      %v1780 = vsel %vm962, %v1624, 0.0
      %1781 = vadd.xlane.f32.xlu0 %v1780
      %v1782 = vpop.xlane.xlu0 %1781
      %v1783 = vsel %vm962, %v1629, 0.0
      %1784 = vadd.xlane.f32.xlu0 %v1783
      %v1785 = vpop.xlane.xlu0 %1784
      %v1786 = vsel %vm962, %v1634, 0.0
      %1787 = vadd.xlane.f32.xlu0 %v1786
      %v1788 = vpop.xlane.xlu0 %1787
      %v1789 = vsel %vm962, %v1639, 0.0
      %1790 = vadd.xlane.f32.xlu0 %v1789
      %v1791 = vpop.xlane.xlu0 %1790
      %v1792 = vsel %vm962, %v1644, 0.0
      %1793 = vadd.xlane.f32.xlu0 %v1792
      %v1794 = vpop.xlane.xlu0 %1793
      %v1795 = vsel %vm962, %v1649, 0.0
      %1796 = vadd.xlane.f32.xlu0 %v1795
      %v1797 = vpop.xlane.xlu0 %1796
      %v1798 = vsel %vm962, %v1654, 0.0
      %1799 = vadd.xlane.f32.xlu0 %v1798
      %v1800 = vpop.xlane.xlu0 %1799
      %v1801 = vsel %vm962, %v1659, 0.0
      %1802 = vadd.xlane.f32.xlu0 %v1801
      %v1803 = vpop.xlane.xlu0 %1802
      %v1804 = vsel %vm962, %v1664, 0.0
      %1805 = vadd.xlane.f32.xlu0 %v1804
      %v1806 = vpop.xlane.xlu0 %1805
      %v1807 = vsel %vm962, %v1669, 0.0
      %1808 = vadd.xlane.f32.xlu0 %v1807
      %v1809 = vpop.xlane.xlu0 %1808
      %v1810 = vsel %vm962, %v1674, 0.0
      %1811 = vadd.xlane.f32.xlu0 %v1810
      %v1812 = vpop.xlane.xlu0 %1811
      %v1813 = vsel %vm962, %v1679, 0.0
      %1814 = vadd.xlane.f32.xlu0 %v1813
      %v1815 = vpop.xlane.xlu0 %1814
      %v1816 = vsel %vm962, %v1684, 0.0
      %1817 = vadd.xlane.f32.xlu0 %v1816
      %v1818 = vpop.xlane.xlu0 %1817
      %v1819 = vsel %vm962, %v1689, 0.0
      %1820 = vadd.xlane.f32.xlu0 %v1819
      %v1821 = vpop.xlane.xlu0 %1820
      %v1822 = vsel %vm962, %v1694, 0.0
      %1823 = vadd.xlane.f32.xlu0 %v1822
      %v1824 = vpop.xlane.xlu0 %1823
      %v1825 = vsel %vm962, %v1699, 0.0
      %1826 = vadd.xlane.f32.xlu0 %v1825
      %v1827 = vpop.xlane.xlu0 %1826
      %v1828 = vsel %vm962, %v1704, 0.0
      %1829 = vadd.xlane.f32.xlu0 %v1828
      %v1830 = vpop.xlane.xlu0 %1829
      %v1831 = vsel %vm962, %v1709, 0.0
      %1832 = vadd.xlane.f32.xlu0 %v1831
      %v1833 = vpop.xlane.xlu0 %1832
      %v1834 = vsel %vm962, %v1714, 0.0
      %1835 = vadd.xlane.f32.xlu0 %v1834
      %v1836 = vpop.xlane.xlu0 %1835
      %v1837 = vsel %vm962, %v1719, 0.0
      %1838 = vadd.xlane.f32.xlu0 %v1837
      %v1839 = vpop.xlane.xlu0 %1838
      %v1840 = vsel %vm962, %v1724, 0.0
      %1841 = vadd.xlane.f32.xlu0 %v1840
      %v1842 = vpop.xlane.xlu0 %1841
      %v1843 = vsel %vm962, %v1729, 0.0
      %1844 = vadd.xlane.f32.xlu0 %v1843
      %v1845 = vpop.xlane.xlu0 %1844
      %v1846 = vsel %vm962, %v1734, 0.0
      %1847 = vadd.xlane.f32.xlu0 %v1846
      %v1848 = vpop.xlane.xlu0 %1847
      %v1849 = vsel %vm962, %v1739, 0.0
      %1850 = vadd.xlane.f32.xlu0 %v1849
      %v1851 = vpop.xlane.xlu0 %1850
      %v1852 = vsel %vm962, %v1744, 0.0
      %1853 = vadd.xlane.f32.xlu0 %v1852
      %v1854 = vpop.xlane.xlu0 %1853
      %v1855 = vsel %vm962, %v1749, 0.0
      %1856 = vadd.xlane.f32.xlu0 %v1855
      %v1857 = vpop.xlane.xlu0 %1856
      %v1858 = vsel %vm962, %v1754, 0.0
      %1859 = vadd.xlane.f32.xlu0 %v1858
      %v1860 = vpop.xlane.xlu0 %1859
      %v1861 = vsel %vm962, %v1759, 0.0
      %1862 = vadd.xlane.f32.xlu0 %v1861
      %v1863 = vpop.xlane.xlu0 %1862
      %v1864 = vsel %vm962, %v1764, 0.0
      %1865 = vadd.xlane.f32.xlu0 %v1864
      %v1866 = vpop.xlane.xlu0 %1865
      %v1867 = vsel %vm962, %v1769, 0.0
      %1868 = vadd.xlane.f32.xlu0 %v1867
      %v1869 = vpop.xlane.xlu0 %1868
      %v1870 = vsel %vm962, %v1774, 0.0
      %1871 = vadd.xlane.f32.xlu0 %v1870
      %v1872 = vpop.xlane.xlu0 %1871
      %v1873 = vmul.f32 %v1779, %v1380
      %v1874 = vmul.f32 %v1782, %v1380
      %v1875 = vmul.f32 %v1785, %v1380
      %v1876 = vmul.f32 %v1788, %v1380
      %v1877 = vmul.f32 %v1791, %v1380
      %v1878 = vmul.f32 %v1794, %v1380
      %v1879 = vmul.f32 %v1797, %v1380
      %v1880 = vmul.f32 %v1800, %v1380
      %v1881 = vmul.f32 %v1803, %v1380
      %v1882 = vmul.f32 %v1806, %v1380
      %v1883 = vmul.f32 %v1809, %v1380
      %v1884 = vmul.f32 %v1812, %v1380
      %v1885 = vmul.f32 %v1815, %v1380
      %v1886 = vmul.f32 %v1818, %v1380
      %v1887 = vmul.f32 %v1821, %v1380
      %v1888 = vmul.f32 %v1824, %v1380
      %v1889 = vmul.f32 %v1827, %v1380
      %v1890 = vmul.f32 %v1830, %v1380
      %v1891 = vmul.f32 %v1833, %v1380
      %v1892 = vmul.f32 %v1836, %v1380
      %v1893 = vmul.f32 %v1839, %v1380
      %v1894 = vmul.f32 %v1842, %v1380
      %v1895 = vmul.f32 %v1845, %v1380
      %v1896 = vmul.f32 %v1848, %v1380
      %v1897 = vmul.f32 %v1851, %v1380
      %v1898 = vmul.f32 %v1854, %v1380
      %v1899 = vmul.f32 %v1857, %v1380
      %v1900 = vmul.f32 %v1860, %v1380
      %v1901 = vmul.f32 %v1863, %v1380
      %v1902 = vmul.f32 %v1866, %v1380
      %v1903 = vmul.f32 %v1869, %v1380
      %v1904 = vmul.f32 %v1872, %v1380
      %v1905 = vadd.f32 %v1873, 1e-05
      %v1906 = vadd.f32 %v1874, 1e-05
      %v1907 = vadd.f32 %v1875, 1e-05
      %v1908 = vadd.f32 %v1876, 1e-05
      %v1909 = vadd.f32 %v1877, 1e-05
      %v1910 = vadd.f32 %v1878, 1e-05
      %v1911 = vadd.f32 %v1879, 1e-05
      %v1912 = vadd.f32 %v1880, 1e-05
      %v1913 = vadd.f32 %v1881, 1e-05
      %v1914 = vadd.f32 %v1882, 1e-05
      %v1915 = vadd.f32 %v1883, 1e-05
      %v1916 = vadd.f32 %v1884, 1e-05
      %v1917 = vadd.f32 %v1885, 1e-05
      %v1918 = vadd.f32 %v1886, 1e-05
      %v1919 = vadd.f32 %v1887, 1e-05
      %v1920 = vadd.f32 %v1888, 1e-05
      %v1921 = vadd.f32 %v1889, 1e-05
      %v1922 = vadd.f32 %v1890, 1e-05
      %v1923 = vadd.f32 %v1891, 1e-05
      %v1924 = vadd.f32 %v1892, 1e-05
      %v1925 = vadd.f32 %v1893, 1e-05
      %v1926 = vadd.f32 %v1894, 1e-05
      %v1927 = vadd.f32 %v1895, 1e-05
      %v1928 = vadd.f32 %v1896, 1e-05
      %v1929 = vadd.f32 %v1897, 1e-05
      %v1930 = vadd.f32 %v1898, 1e-05
      %v1931 = vadd.f32 %v1899, 1e-05
      %v1932 = vadd.f32 %v1900, 1e-05
      %v1933 = vadd.f32 %v1901, 1e-05
      %v1934 = vadd.f32 %v1902, 1e-05
      %v1935 = vadd.f32 %v1903, 1e-05
      %v1936 = vadd.f32 %v1904, 1e-05
      %v1937 = vrsqrt.pop %v1905
      %v1938 = vrsqrt.pop %v1906
      %v1939 = vrsqrt.pop %v1907
      %v1940 = vrsqrt.pop %v1908
      %v1941 = vrsqrt.pop %v1909
      %v1942 = vrsqrt.pop %v1910
      %v1943 = vrsqrt.pop %v1911
      %v1944 = vrsqrt.pop %v1912
      %v1945 = vrsqrt.pop %v1913
      %v1946 = vrsqrt.pop %v1914
      %v1947 = vrsqrt.pop %v1915
      %v1948 = vrsqrt.pop %v1916
      %v1949 = vrsqrt.pop %v1917
      %v1950 = vrsqrt.pop %v1918
      %v1951 = vrsqrt.pop %v1919
      %v1952 = vrsqrt.pop %v1920
      %v1953 = vrsqrt.pop %v1921
      %v1954 = vrsqrt.pop %v1922
      %v1955 = vrsqrt.pop %v1923
      %v1956 = vrsqrt.pop %v1924
      %v1957 = vrsqrt.pop %v1925
      %v1958 = vrsqrt.pop %v1926
      %v1959 = vrsqrt.pop %v1927
      %v1960 = vrsqrt.pop %v1928
      %v1961 = vrsqrt.pop %v1929
      %v1962 = vrsqrt.pop %v1930
      %v1963 = vrsqrt.pop %v1931
      %v1964 = vrsqrt.pop %v1932
      %v1965 = vrsqrt.pop %v1933
      %v1966 = vrsqrt.pop %v1934
      %v1967 = vrsqrt.pop %v1935
      %v1968 = vrsqrt.pop %v1936
      %v1969 = vmul.f32 %v1413, %v1937
      %v1970 = vmul.f32 %v1414, %v1938
      %v1971 = vmul.f32 %v1415, %v1939
      %v1972 = vmul.f32 %v1416, %v1940
      %v1973 = vmul.f32 %v1417, %v1941
      %v1974 = vmul.f32 %v1418, %v1942
      %v1975 = vmul.f32 %v1419, %v1943
      %v1976 = vmul.f32 %v1420, %v1944
      %v1977 = vmul.f32 %v1421, %v1945
      %v1978 = vmul.f32 %v1422, %v1946
      %v1979 = vmul.f32 %v1423, %v1947
      %v1980 = vmul.f32 %v1424, %v1948
      %v1981 = vmul.f32 %v1425, %v1949
      %v1982 = vmul.f32 %v1426, %v1950
      %v1983 = vmul.f32 %v1427, %v1951
      %v1984 = vmul.f32 %v1428, %v1952
      %v1985 = vmul.f32 %v1429, %v1953
      %v1986 = vmul.f32 %v1430, %v1954
      %v1987 = vmul.f32 %v1431, %v1955
      %v1988 = vmul.f32 %v1432, %v1956
      %v1989 = vmul.f32 %v1433, %v1957
      %v1990 = vmul.f32 %v1434, %v1958
      %v1991 = vmul.f32 %v1435, %v1959
      %v1992 = vmul.f32 %v1436, %v1960
      %v1993 = vmul.f32 %v1437, %v1961
      %v1994 = vmul.f32 %v1438, %v1962
      %v1995 = vmul.f32 %v1439, %v1963
      %v1996 = vmul.f32 %v1440, %v1964
      %v1997 = vmul.f32 %v1441, %v1965
      %v1998 = vmul.f32 %v1442, %v1966
      %v1999 = vmul.f32 %v1443, %v1967
      %v2000 = vmul.f32 %v1444, %v1968
      %v2001 = vld [vmem:[%s5] sm:$0xff]
      %v2002 = vld [vmem:[%s5 + $0x8] sm:$0xff]
      %v2003 = vld [vmem:[%s5 + $0x10] sm:$0xff]
      %v2004 = vld [vmem:[%s5 + $0x18] sm:$0xff]
      %v2005 = vld [vmem:[%s5 + $0x20] sm:$0xff]
      %v2006 = vld [vmem:[%s5 + $0x28] sm:$0xff]
      %v2007 = vld [vmem:[%s5 + $0x30] sm:$0xff]
      %v2008 = vld [vmem:[%s5 + $0x38] sm:$0xff]
      %v2009 = vld [vmem:[%s5 + $0x40] sm:$0xff]
      %v2010 = vld [vmem:[%s5 + $0x48] sm:$0xff]
      %v2011 = vld [vmem:[%s5 + $0x50] sm:$0xff]
      %v2012 = vld [vmem:[%s5 + $0x58] sm:$0xff]
      %v2013 = vld [vmem:[%s5 + $0x60] sm:$0xff]
      %v2014 = vld [vmem:[%s5 + $0x68] sm:$0xff]
      %v2015 = vld [vmem:[%s5 + $0x70] sm:$0xff]
      %v2016 = vld [vmem:[%s5 + $0x78] sm:$0xff]
      %v2017 = vld [vmem:[%s5 + $0x80] sm:$0xff]
      %v2018 = vld [vmem:[%s5 + $0x88] sm:$0xff]
      %v2019 = vld [vmem:[%s5 + $0x90] sm:$0xff]
      %v2020 = vld [vmem:[%s5 + $0x98] sm:$0xff]
      %v2021 = vld [vmem:[%s5 + $0xa0] sm:$0xff]
      %v2022 = vld [vmem:[%s5 + $0xa8] sm:$0xff]
      %v2023 = vld [vmem:[%s5 + $0xb0] sm:$0xff]
      %v2024 = vld [vmem:[%s5 + $0xb8] sm:$0xff]
      %v2025 = vld [vmem:[%s5 + $0xc0] sm:$0xff]
      %v2026 = vld [vmem:[%s5 + $0xc8] sm:$0xff]
      %v2027 = vld [vmem:[%s5 + $0xd0] sm:$0xff]
      %v2028 = vld [vmem:[%s5 + $0xd8] sm:$0xff]
      %v2029 = vld [vmem:[%s5 + $0xe0] sm:$0xff]
      %v2030 = vld [vmem:[%s5 + $0xe8] sm:$0xff]
      %v2031 = vld [vmem:[%s5 + $0xf0] sm:$0xff]
      %v2032 = vld [vmem:[%s5 + $0xf8] sm:$0xff]
      %2034 = vset.pattern.permute.xlu0 0
      %2035 = vperm.xlu0 %2034, %v2001
      %v2036 = vpop.permute.xlu0 %2035
      %2039 = vset.pattern.permute.xlu0 0
      %2040 = vperm.xlu0 %2039, %v2002
      %v2041 = vpop.permute.xlu0 %2040
      %2044 = vset.pattern.permute.xlu0 0
      %2045 = vperm.xlu0 %2044, %v2003
      %v2046 = vpop.permute.xlu0 %2045
      %2049 = vset.pattern.permute.xlu0 0
      %2050 = vperm.xlu0 %2049, %v2004
      %v2051 = vpop.permute.xlu0 %2050
      %2054 = vset.pattern.permute.xlu0 0
      %2055 = vperm.xlu0 %2054, %v2005
      %v2056 = vpop.permute.xlu0 %2055
      %2059 = vset.pattern.permute.xlu0 0
      %2060 = vperm.xlu0 %2059, %v2006
      %v2061 = vpop.permute.xlu0 %2060
      %2064 = vset.pattern.permute.xlu0 0
      %2065 = vperm.xlu0 %2064, %v2007
      %v2066 = vpop.permute.xlu0 %2065
      %2069 = vset.pattern.permute.xlu0 0
      %2070 = vperm.xlu0 %2069, %v2008
      %v2071 = vpop.permute.xlu0 %2070
      %2074 = vset.pattern.permute.xlu0 0
      %2075 = vperm.xlu0 %2074, %v2009
      %v2076 = vpop.permute.xlu0 %2075
      %2079 = vset.pattern.permute.xlu0 0
      %2080 = vperm.xlu0 %2079, %v2010
      %v2081 = vpop.permute.xlu0 %2080
      %2084 = vset.pattern.permute.xlu0 0
      %2085 = vperm.xlu0 %2084, %v2011
      %v2086 = vpop.permute.xlu0 %2085
      %2089 = vset.pattern.permute.xlu0 0
      %2090 = vperm.xlu0 %2089, %v2012
      %v2091 = vpop.permute.xlu0 %2090
      %2094 = vset.pattern.permute.xlu0 0
      %2095 = vperm.xlu0 %2094, %v2013
      %v2096 = vpop.permute.xlu0 %2095
      %2099 = vset.pattern.permute.xlu0 0
      %2100 = vperm.xlu0 %2099, %v2014
      %v2101 = vpop.permute.xlu0 %2100
      %2104 = vset.pattern.permute.xlu0 0
      %2105 = vperm.xlu0 %2104, %v2015
      %v2106 = vpop.permute.xlu0 %2105
      %2109 = vset.pattern.permute.xlu0 0
      %2110 = vperm.xlu0 %2109, %v2016
      %v2111 = vpop.permute.xlu0 %2110
      %2114 = vset.pattern.permute.xlu0 0
      %2115 = vperm.xlu0 %2114, %v2017
      %v2116 = vpop.permute.xlu0 %2115
      %2119 = vset.pattern.permute.xlu0 0
      %2120 = vperm.xlu0 %2119, %v2018
      %v2121 = vpop.permute.xlu0 %2120
      %2124 = vset.pattern.permute.xlu0 0
      %2125 = vperm.xlu0 %2124, %v2019
      %v2126 = vpop.permute.xlu0 %2125
      %2129 = vset.pattern.permute.xlu0 0
      %2130 = vperm.xlu0 %2129, %v2020
      %v2131 = vpop.permute.xlu0 %2130
      %2134 = vset.pattern.permute.xlu0 0
      %2135 = vperm.xlu0 %2134, %v2021
      %v2136 = vpop.permute.xlu0 %2135
      %2139 = vset.pattern.permute.xlu0 0
      %2140 = vperm.xlu0 %2139, %v2022
      %v2141 = vpop.permute.xlu0 %2140
      %2144 = vset.pattern.permute.xlu0 0
      %2145 = vperm.xlu0 %2144, %v2023
      %v2146 = vpop.permute.xlu0 %2145
      %2149 = vset.pattern.permute.xlu0 0
      %2150 = vperm.xlu0 %2149, %v2024
      %v2151 = vpop.permute.xlu0 %2150
      %2154 = vset.pattern.permute.xlu0 0
      %2155 = vperm.xlu0 %2154, %v2025
      %v2156 = vpop.permute.xlu0 %2155
      %2159 = vset.pattern.permute.xlu0 0
      %2160 = vperm.xlu0 %2159, %v2026
      %v2161 = vpop.permute.xlu0 %2160
      %2164 = vset.pattern.permute.xlu0 0
      %2165 = vperm.xlu0 %2164, %v2027
      %v2166 = vpop.permute.xlu0 %2165
      %2169 = vset.pattern.permute.xlu0 0
      %2170 = vperm.xlu0 %2169, %v2028
      %v2171 = vpop.permute.xlu0 %2170
      %2174 = vset.pattern.permute.xlu0 0
      %2175 = vperm.xlu0 %2174, %v2029
      %v2176 = vpop.permute.xlu0 %2175
      %2179 = vset.pattern.permute.xlu0 0
      %2180 = vperm.xlu0 %2179, %v2030
      %v2181 = vpop.permute.xlu0 %2180
      %2184 = vset.pattern.permute.xlu0 0
      %2185 = vperm.xlu0 %2184, %v2031
      %v2186 = vpop.permute.xlu0 %2185
      %2189 = vset.pattern.permute.xlu0 0
      %2190 = vperm.xlu0 %2189, %v2032
      %v2191 = vpop.permute.xlu0 %2190
      %v2193 = vmul.f32 %v1969, %v2036
      %v2194 = vmul.f32 %v1970, %v2041
      %v2195 = vmul.f32 %v1971, %v2046
      %v2196 = vmul.f32 %v1972, %v2051
      %v2197 = vmul.f32 %v1973, %v2056
      %v2198 = vmul.f32 %v1974, %v2061
      %v2199 = vmul.f32 %v1975, %v2066
      %v2200 = vmul.f32 %v1976, %v2071
      %v2201 = vmul.f32 %v1977, %v2076
      %v2202 = vmul.f32 %v1978, %v2081
      %v2203 = vmul.f32 %v1979, %v2086
      %v2204 = vmul.f32 %v1980, %v2091
      %v2205 = vmul.f32 %v1981, %v2096
      %v2206 = vmul.f32 %v1982, %v2101
      %v2207 = vmul.f32 %v1983, %v2106
      %v2208 = vmul.f32 %v1984, %v2111
      %v2209 = vmul.f32 %v1985, %v2116
      %v2210 = vmul.f32 %v1986, %v2121
      %v2211 = vmul.f32 %v1987, %v2126
      %v2212 = vmul.f32 %v1988, %v2131
      %v2213 = vmul.f32 %v1989, %v2136
      %v2214 = vmul.f32 %v1990, %v2141
      %v2215 = vmul.f32 %v1991, %v2146
      %v2216 = vmul.f32 %v1992, %v2151
      %v2217 = vmul.f32 %v1993, %v2156
      %v2218 = vmul.f32 %v1994, %v2161
      %v2219 = vmul.f32 %v1995, %v2166
      %v2220 = vmul.f32 %v1996, %v2171
      %v2221 = vmul.f32 %v1997, %v2176
      %v2222 = vmul.f32 %v1998, %v2181
      %v2223 = vmul.f32 %v1999, %v2186
      %v2224 = vmul.f32 %v2000, %v2191
      %v2225 = vld [vmem:[%s6] sm:$0xff]
      %v2226 = vld [vmem:[%s6 + $0x8] sm:$0xff]
      %v2227 = vld [vmem:[%s6 + $0x10] sm:$0xff]
      %v2228 = vld [vmem:[%s6 + $0x18] sm:$0xff]
      %v2229 = vld [vmem:[%s6 + $0x20] sm:$0xff]
      %v2230 = vld [vmem:[%s6 + $0x28] sm:$0xff]
      %v2231 = vld [vmem:[%s6 + $0x30] sm:$0xff]
      %v2232 = vld [vmem:[%s6 + $0x38] sm:$0xff]
      %v2233 = vld [vmem:[%s6 + $0x40] sm:$0xff]
      %v2234 = vld [vmem:[%s6 + $0x48] sm:$0xff]
      %v2235 = vld [vmem:[%s6 + $0x50] sm:$0xff]
      %v2236 = vld [vmem:[%s6 + $0x58] sm:$0xff]
      %v2237 = vld [vmem:[%s6 + $0x60] sm:$0xff]
      %v2238 = vld [vmem:[%s6 + $0x68] sm:$0xff]
      %v2239 = vld [vmem:[%s6 + $0x70] sm:$0xff]
      %v2240 = vld [vmem:[%s6 + $0x78] sm:$0xff]
      %v2241 = vld [vmem:[%s6 + $0x80] sm:$0xff]
      %v2242 = vld [vmem:[%s6 + $0x88] sm:$0xff]
      %v2243 = vld [vmem:[%s6 + $0x90] sm:$0xff]
      %v2244 = vld [vmem:[%s6 + $0x98] sm:$0xff]
      %v2245 = vld [vmem:[%s6 + $0xa0] sm:$0xff]
      %v2246 = vld [vmem:[%s6 + $0xa8] sm:$0xff]
      %v2247 = vld [vmem:[%s6 + $0xb0] sm:$0xff]
      %v2248 = vld [vmem:[%s6 + $0xb8] sm:$0xff]
      %v2249 = vld [vmem:[%s6 + $0xc0] sm:$0xff]
      %v2250 = vld [vmem:[%s6 + $0xc8] sm:$0xff]
      %v2251 = vld [vmem:[%s6 + $0xd0] sm:$0xff]
      %v2252 = vld [vmem:[%s6 + $0xd8] sm:$0xff]
      %v2253 = vld [vmem:[%s6 + $0xe0] sm:$0xff]
      %v2254 = vld [vmem:[%s6 + $0xe8] sm:$0xff]
      %v2255 = vld [vmem:[%s6 + $0xf0] sm:$0xff]
      %v2256 = vld [vmem:[%s6 + $0xf8] sm:$0xff]
      %2258 = vset.pattern.permute.xlu0 0
      %2259 = vperm.xlu0 %2258, %v2225
      %v2260 = vpop.permute.xlu0 %2259
      %2263 = vset.pattern.permute.xlu0 0
      %2264 = vperm.xlu0 %2263, %v2226
      %v2265 = vpop.permute.xlu0 %2264
      %2268 = vset.pattern.permute.xlu0 0
      %2269 = vperm.xlu0 %2268, %v2227
      %v2270 = vpop.permute.xlu0 %2269
      %2273 = vset.pattern.permute.xlu0 0
      %2274 = vperm.xlu0 %2273, %v2228
      %v2275 = vpop.permute.xlu0 %2274
      %2278 = vset.pattern.permute.xlu0 0
      %2279 = vperm.xlu0 %2278, %v2229
      %v2280 = vpop.permute.xlu0 %2279
      %2283 = vset.pattern.permute.xlu0 0
      %2284 = vperm.xlu0 %2283, %v2230
      %v2285 = vpop.permute.xlu0 %2284
      %2288 = vset.pattern.permute.xlu0 0
      %2289 = vperm.xlu0 %2288, %v2231
      %v2290 = vpop.permute.xlu0 %2289
      %2293 = vset.pattern.permute.xlu0 0
      %2294 = vperm.xlu0 %2293, %v2232
      %v2295 = vpop.permute.xlu0 %2294
      %2298 = vset.pattern.permute.xlu0 0
      %2299 = vperm.xlu0 %2298, %v2233
      %v2300 = vpop.permute.xlu0 %2299
      %2303 = vset.pattern.permute.xlu0 0
      %2304 = vperm.xlu0 %2303, %v2234
      %v2305 = vpop.permute.xlu0 %2304
      %2308 = vset.pattern.permute.xlu0 0
      %2309 = vperm.xlu0 %2308, %v2235
      %v2310 = vpop.permute.xlu0 %2309
      %2313 = vset.pattern.permute.xlu0 0
      %2314 = vperm.xlu0 %2313, %v2236
      %v2315 = vpop.permute.xlu0 %2314
      %2318 = vset.pattern.permute.xlu0 0
      %2319 = vperm.xlu0 %2318, %v2237
      %v2320 = vpop.permute.xlu0 %2319
      %2323 = vset.pattern.permute.xlu0 0
      %2324 = vperm.xlu0 %2323, %v2238
      %v2325 = vpop.permute.xlu0 %2324
      %2328 = vset.pattern.permute.xlu0 0
      %2329 = vperm.xlu0 %2328, %v2239
      %v2330 = vpop.permute.xlu0 %2329
      %2333 = vset.pattern.permute.xlu0 0
      %2334 = vperm.xlu0 %2333, %v2240
      %v2335 = vpop.permute.xlu0 %2334
      %2338 = vset.pattern.permute.xlu0 0
      %2339 = vperm.xlu0 %2338, %v2241
      %v2340 = vpop.permute.xlu0 %2339
      %2343 = vset.pattern.permute.xlu0 0
      %2344 = vperm.xlu0 %2343, %v2242
      %v2345 = vpop.permute.xlu0 %2344
      %2348 = vset.pattern.permute.xlu0 0
      %2349 = vperm.xlu0 %2348, %v2243
      %v2350 = vpop.permute.xlu0 %2349
      %2353 = vset.pattern.permute.xlu0 0
      %2354 = vperm.xlu0 %2353, %v2244
      %v2355 = vpop.permute.xlu0 %2354
      %2358 = vset.pattern.permute.xlu0 0
      %2359 = vperm.xlu0 %2358, %v2245
      %v2360 = vpop.permute.xlu0 %2359
      %2363 = vset.pattern.permute.xlu0 0
      %2364 = vperm.xlu0 %2363, %v2246
      %v2365 = vpop.permute.xlu0 %2364
      %2368 = vset.pattern.permute.xlu0 0
      %2369 = vperm.xlu0 %2368, %v2247
      %v2370 = vpop.permute.xlu0 %2369
      %2373 = vset.pattern.permute.xlu0 0
      %2374 = vperm.xlu0 %2373, %v2248
      %v2375 = vpop.permute.xlu0 %2374
      %2378 = vset.pattern.permute.xlu0 0
      %2379 = vperm.xlu0 %2378, %v2249
      %v2380 = vpop.permute.xlu0 %2379
      %2383 = vset.pattern.permute.xlu0 0
      %2384 = vperm.xlu0 %2383, %v2250
      %v2385 = vpop.permute.xlu0 %2384
      %2388 = vset.pattern.permute.xlu0 0
      %2389 = vperm.xlu0 %2388, %v2251
      %v2390 = vpop.permute.xlu0 %2389
      %2393 = vset.pattern.permute.xlu0 0
      %2394 = vperm.xlu0 %2393, %v2252
      %v2395 = vpop.permute.xlu0 %2394
      %2398 = vset.pattern.permute.xlu0 0
      %2399 = vperm.xlu0 %2398, %v2253
      %v2400 = vpop.permute.xlu0 %2399
      %2403 = vset.pattern.permute.xlu0 0
      %2404 = vperm.xlu0 %2403, %v2254
      %v2405 = vpop.permute.xlu0 %2404
      %2408 = vset.pattern.permute.xlu0 0
      %2409 = vperm.xlu0 %2408, %v2255
      %v2410 = vpop.permute.xlu0 %2409
      %2413 = vset.pattern.permute.xlu0 0
      %2414 = vperm.xlu0 %2413, %v2256
      %v2415 = vpop.permute.xlu0 %2414
      %v2417 = vadd.f32 %v2193, %v2260
      %v2418 = vadd.f32 %v2194, %v2265
      %v2419 = vadd.f32 %v2195, %v2270
      %v2420 = vadd.f32 %v2196, %v2275
      %v2421 = vadd.f32 %v2197, %v2280
      %v2422 = vadd.f32 %v2198, %v2285
      %v2423 = vadd.f32 %v2199, %v2290
      %v2424 = vadd.f32 %v2200, %v2295
      %v2425 = vadd.f32 %v2201, %v2300
      %v2426 = vadd.f32 %v2202, %v2305
      %v2427 = vadd.f32 %v2203, %v2310
      %v2428 = vadd.f32 %v2204, %v2315
      %v2429 = vadd.f32 %v2205, %v2320
      %v2430 = vadd.f32 %v2206, %v2325
      %v2431 = vadd.f32 %v2207, %v2330
      %v2432 = vadd.f32 %v2208, %v2335
      %v2433 = vadd.f32 %v2209, %v2340
      %v2434 = vadd.f32 %v2210, %v2345
      %v2435 = vadd.f32 %v2211, %v2350
      %v2436 = vadd.f32 %v2212, %v2355
      %v2437 = vadd.f32 %v2213, %v2360
      %v2438 = vadd.f32 %v2214, %v2365
      %v2439 = vadd.f32 %v2215, %v2370
      %v2440 = vadd.f32 %v2216, %v2375
      %v2441 = vadd.f32 %v2217, %v2380
      %v2442 = vadd.f32 %v2218, %v2385
      %v2443 = vadd.f32 %v2219, %v2390
      %v2444 = vadd.f32 %v2220, %v2395
      %v2445 = vadd.f32 %v2221, %v2400
      %v2446 = vadd.f32 %v2222, %v2405
      %v2447 = vadd.f32 %v2223, %v2410
      %v2448 = vadd.f32 %v2224, %v2415
      %v2449 = vmax.f32 %v2417, 0.0
      %v2450 = vmax.f32 %v2418, 0.0
      %v2451 = vmax.f32 %v2419, 0.0
      %v2452 = vmax.f32 %v2420, 0.0
      %v2453 = vmax.f32 %v2421, 0.0
      %v2454 = vmax.f32 %v2422, 0.0
      %v2455 = vmax.f32 %v2423, 0.0
      %v2456 = vmax.f32 %v2424, 0.0
      %v2457 = vmax.f32 %v2425, 0.0
      %v2458 = vmax.f32 %v2426, 0.0
      %v2459 = vmax.f32 %v2427, 0.0
      %v2460 = vmax.f32 %v2428, 0.0
      %v2461 = vmax.f32 %v2429, 0.0
      %v2462 = vmax.f32 %v2430, 0.0
      %v2463 = vmax.f32 %v2431, 0.0
      %v2464 = vmax.f32 %v2432, 0.0
      %v2465 = vmax.f32 %v2433, 0.0
      %v2466 = vmax.f32 %v2434, 0.0
      %v2467 = vmax.f32 %v2435, 0.0
      %v2468 = vmax.f32 %v2436, 0.0
      %v2469 = vmax.f32 %v2437, 0.0
      %v2470 = vmax.f32 %v2438, 0.0
      %v2471 = vmax.f32 %v2439, 0.0
      %v2472 = vmax.f32 %v2440, 0.0
      %v2473 = vmax.f32 %v2441, 0.0
      %v2474 = vmax.f32 %v2442, 0.0
      %v2475 = vmax.f32 %v2443, 0.0
      %v2476 = vmax.f32 %v2444, 0.0
      %v2477 = vmax.f32 %v2445, 0.0
      %v2478 = vmax.f32 %v2446, 0.0
      %v2479 = vmax.f32 %v2447, 0.0
      %v2480 = vmax.f32 %v2448, 0.0
      %2481 = vst.msk [vmem:[%s272] sm:$0xff] %vm962, %v2449
      %2482 = vst.msk [vmem:[%s272 + $0x8] sm:$0xff] %vm962, %v2450
      %2483 = vst.msk [vmem:[%s272 + $0x10] sm:$0xff] %vm962, %v2451
      %2484 = vst.msk [vmem:[%s272 + $0x18] sm:$0xff] %vm962, %v2452
      %2485 = vst.msk [vmem:[%s272 + $0x20] sm:$0xff] %vm962, %v2453
      %2486 = vst.msk [vmem:[%s272 + $0x28] sm:$0xff] %vm962, %v2454
      %2487 = vst.msk [vmem:[%s272 + $0x30] sm:$0xff] %vm962, %v2455
      %2488 = vst.msk [vmem:[%s272 + $0x38] sm:$0xff] %vm962, %v2456
      %2489 = vst.msk [vmem:[%s272 + $0x40] sm:$0xff] %vm962, %v2457
      %2490 = vst.msk [vmem:[%s272 + $0x48] sm:$0xff] %vm962, %v2458
      %2491 = vst.msk [vmem:[%s272 + $0x50] sm:$0xff] %vm962, %v2459
      %2492 = vst.msk [vmem:[%s272 + $0x58] sm:$0xff] %vm962, %v2460
      %2493 = vst.msk [vmem:[%s272 + $0x60] sm:$0xff] %vm962, %v2461
      %2494 = vst.msk [vmem:[%s272 + $0x68] sm:$0xff] %vm962, %v2462
      %2495 = vst.msk [vmem:[%s272 + $0x70] sm:$0xff] %vm962, %v2463
      %2496 = vst.msk [vmem:[%s272 + $0x78] sm:$0xff] %vm962, %v2464
      %2497 = vst.msk [vmem:[%s272 + $0x80] sm:$0xff] %vm962, %v2465
      %2498 = vst.msk [vmem:[%s272 + $0x88] sm:$0xff] %vm962, %v2466
      %2499 = vst.msk [vmem:[%s272 + $0x90] sm:$0xff] %vm962, %v2467
      %2500 = vst.msk [vmem:[%s272 + $0x98] sm:$0xff] %vm962, %v2468
      %2501 = vst.msk [vmem:[%s272 + $0xa0] sm:$0xff] %vm962, %v2469
      %2502 = vst.msk [vmem:[%s272 + $0xa8] sm:$0xff] %vm962, %v2470
      %2503 = vst.msk [vmem:[%s272 + $0xb0] sm:$0xff] %vm962, %v2471
      %2504 = vst.msk [vmem:[%s272 + $0xb8] sm:$0xff] %vm962, %v2472
      %2505 = vst.msk [vmem:[%s272 + $0xc0] sm:$0xff] %vm962, %v2473
      %2506 = vst.msk [vmem:[%s272 + $0xc8] sm:$0xff] %vm962, %v2474
      %2507 = vst.msk [vmem:[%s272 + $0xd0] sm:$0xff] %vm962, %v2475
      %2508 = vst.msk [vmem:[%s272 + $0xd8] sm:$0xff] %vm962, %v2476
      %2509 = vst.msk [vmem:[%s272 + $0xe0] sm:$0xff] %vm962, %v2477
      %2510 = vst.msk [vmem:[%s272 + $0xe8] sm:$0xff] %vm962, %v2478
      %2511 = vst.msk [vmem:[%s272 + $0xf0] sm:$0xff] %vm962, %v2479
      %2512 = vst.msk [vmem:[%s272 + $0xf8] sm:$0xff] %vm962, %v2480
      %p2513 = scmp.lt.s32.totalorder %s18, 1
      %s2514 = scalar_select %p2513, %s18, 1
      %s2515 = smul.addr %s2514, 32
      %s2516 = smul.addr %s2515, 8
      %s2517 = scalar_lea.vmem %s7, %s2516
      // Predicated region
      $region49: #{conv1d_groupnorm_relu.1} parent=47 // pred_check
        %p2518 = pneg %p188
      $region50: #{conv1d_groupnorm_relu.1} parent=47 // pred_check_branch
        %2520 = sbr.rel (%p2518) target = $region52
      $region51: #{conv1d_groupnorm_relu.1} parent=47 // pred_region
        _
      $region52: #{conv1d_groupnorm_relu.1} parent=47 // pred_fallthru
        _
    $region48: #{conv1d_groupnorm_relu.1} parent=5 // pred_fallthru
      _
    %p2521 = scmp.le.s32.totalorder 2, %s13
    // Predicated region
    $region53: #{conv1d_groupnorm_relu.1} parent=5 // pred_check
      %p2522 = pneg %p2521
    $region54: #{conv1d_groupnorm_relu.1} parent=5 // pred_check_branch
      %2524 = sbr.rel (%p2522) target = $region56
    $region55: #{conv1d_groupnorm_relu.1} parent=5 // pred_region
      %s2525 = ssub.s32 %s13, 2
      // Predicated region
      $region57: #{conv1d_groupnorm_relu.1} parent=55 // pred_check
        %p2526 = pneg %p194
      $region58: #{conv1d_groupnorm_relu.1} parent=55 // pred_check_branch
        %2528 = sbr.rel (%p2526) target = $region60
      $region59: #{conv1d_groupnorm_relu.1} parent=55 // pred_region
        %p2529 = scmp.lt.s32.totalorder %s19, 1
        %s2530 = scalar_select %p2529, %s19, 1
        %s2531 = smul.addr %s2530, 32
        %s2532 = smul.addr %s2531, 8
        %s2533 = scalar_lea.vmem %s7, %s2532
      $region60: #{conv1d_groupnorm_relu.1} parent=55 // pred_fallthru
        _
    $region56: #{conv1d_groupnorm_relu.1} parent=5 // pred_fallthru
      _
  $region6: #{conv1d_groupnorm_relu.1} parent=0 // loop_footer
    %s17 = sadd.s32 1, %s13
  $region7: #{conv1d_groupnorm_relu.1} parent=0 // loop_footer_branch
    %12 = sbr.rel target = $region3
  $region8: #{conv1d_groupnorm_relu.1} parent=0 // loop_exit
    _

</llo_original>
